<compile_context>
chip_gen: v6e
topology: v6e:2x2x1
jax: 0.10.0
libtpu: 0.0.40
codegen_flags: <defaults>
</compile_context>

<pallas_src>
import functools

import jax
import jax.numpy as jnp
from jax.experimental import pallas as pl
from jax.experimental.pallas import tpu as pltpu

LANE = 128  # lane-dense padding width for the final (width-1) head


# ----------------------------- fused Pallas kernel ---------------------------

def _fused_sage_lut_kernel(
        adj_ref, pool_ref, x_ref,
        w_pre, b_pre,
        w_c1, b_c1, w_l1, b_l1,
        w_c2, b_c2, w_l2, b_l2,
        w_c3, b_c3, w_oo, b_oo,
        w_oh, b_oh, bn_s, bn_t,
        w_h1, b_h1,
        o_ref):
    f32 = jnp.float32
    adj = adj_ref[...]          # (N, N) row-normalized, VMEM-resident once
    x = x_ref[...]              # (N, Cin)

    def lin(h, w_ref, b_ref):
        return jnp.dot(h, w_ref[...], preferred_element_type=f32) + b_ref[...]

    def sage(h, w_ref, b_ref):
        # PyG SAGEConv (mean aggr): lin_l(mean_j x_j) + lin_r(x_i)
        # fused as a single matmul on [aggr | x] with stacked [wl; wr].
        aggr = jnp.dot(adj, h, preferred_element_type=f32)
        return lin(jnp.concatenate([aggr, h], axis=-1), w_ref, b_ref)

    relu = lambda v: jnp.maximum(v, 0.0)
    leaky = lambda v: jnp.where(v > 0, v, 0.01 * v)  # torch LeakyReLU default

    h = lin(x, w_pre, b_pre)            # prelin
    h = relu(sage(h, w_c1, b_c1))       # conv1 + relu
    h = leaky(lin(h, w_l1, b_l1))       # lin_hh1 + dropout(eval) + leakyrelu
    h = relu(sage(h, w_c2, b_c2))       # conv2 + relu
    h = leaky(lin(h, w_l2, b_l2))       # lin_hh2 + dropout(eval) + leakyrelu
    h = relu(sage(h, w_c3, b_c3))       # conv3 + relu
    h = leaky(lin(h, w_oo, b_oo))       # lin_oo + dropout(eval) + leakyrelu

    g = jnp.dot(pool_ref[...], h, preferred_element_type=f32)  # global_mean_pool
    g = lin(g, w_oh, b_oh)              # lin_oh
    g = leaky(g * bn_s[...] + bn_t[...])  # norm_h(eval) + dropout(eval) + leaky
    o_ref[...] = relu(lin(g, w_h1, b_h1))  # lin_h1 + relu (128-lane padded slab)


# ------------------------------ parameters -----------------------------------

def init_params(in_channels, hidden, out_channels, seed=12345):
    keys = jax.random.split(jax.random.PRNGKey(seed), 16)

    def lin_init(key, fi, fo, bias=True):
        kw, kb = jax.random.split(key)
        bound = 1.0 / float(fi) ** 0.5
        w = jax.random.uniform(kw, (fi, fo), jnp.float32, -bound, bound)
        b = (jax.random.uniform(kb, (1, fo), jnp.float32, -bound, bound)
             if bias else jnp.zeros((1, fo), jnp.float32))
        return w, b

    def sage_init(k1, k2, fi, fo):
        wl, bl = lin_init(k1, fi, fo)              # lin_l (on aggregated nbrs)
        wr, _ = lin_init(k2, fi, fo, bias=False)   # lin_r (on root), no bias
        return jnp.concatenate([wl, wr], axis=0), bl   # stacked (2*fi, fo)

    p = {}
    p["prelin_w"], p["prelin_b"] = lin_init(keys[0], in_channels, hidden)
    p["conv1_w"], p["conv1_b"] = sage_init(keys[1], keys[2], hidden, hidden)
    p["conv2_w"], p["conv2_b"] = sage_init(keys[3], keys[4], hidden, hidden)
    p["conv3_w"], p["conv3_b"] = sage_init(keys[5], keys[6], hidden, out_channels)
    p["lin_hh1_w"], p["lin_hh1_b"] = lin_init(keys[7], hidden, hidden)
    p["lin_hh2_w"], p["lin_hh2_b"] = lin_init(keys[8], hidden, hidden)
    p["lin_oo_w"], p["lin_oo_b"] = lin_init(keys[9], out_channels, out_channels)
    p["lin_oh_w"], p["lin_oh_b"] = lin_init(keys[10], out_channels, hidden)

    w_h1, b_h1 = lin_init(keys[11], hidden, 1)
    # Zero-pad the width-1 head to a full 128-lane slab (lane-dense store);
    # padded columns stay exactly 0 through relu and are sliced off outside.
    p["lin_h1_w"] = jnp.pad(w_h1, ((0, 0), (0, LANE - 1)))
    p["lin_h1_b"] = jnp.pad(b_h1, ((0, 0), (0, LANE - 1)))

    # BatchNorm1d(hidden) eval-mode running stats / affine at init.
    p["bn_gamma"] = jnp.ones((1, hidden), jnp.float32)
    p["bn_beta"] = jnp.zeros((1, hidden), jnp.float32)
    p["bn_mean"] = jnp.zeros((1, hidden), jnp.float32)
    p["bn_var"] = jnp.ones((1, hidden), jnp.float32)
    return p


# ------------------------------ forward pass ----------------------------------

@functools.partial(jax.jit, static_argnames=("num_graphs",))
def sage_lut_forward(p, x, edge_index, batch, num_graphs):
    N = x.shape[0]
    src, dst = edge_index[0], edge_index[1]

    # MXU-friendly adjacency: counts[i, j] = #edges j -> i, no scatter-add.
    dst_oh = jax.nn.one_hot(dst, N, dtype=jnp.float32)          # (E, N)
    src_oh = jax.nn.one_hot(src, N, dtype=jnp.float32)          # (E, N)
    adj = dst_oh.T @ src_oh                                     # (N, N)
    deg = adj.sum(axis=1, keepdims=True)
    adj = adj / jnp.maximum(deg, 1.0)                           # mean aggregation

    # global_mean_pool as a (G, N) row-normalized pooling matrix.
    pool = jax.nn.one_hot(batch, num_graphs, dtype=jnp.float32).T
    cnt = pool.sum(axis=1, keepdims=True)
    pool = pool / jnp.maximum(cnt, 1.0)

    # Fold eval-mode BatchNorm1d into a per-channel scale/shift.
    bn_scale = p["bn_gamma"] / jnp.sqrt(p["bn_var"] + 1e-5)
    bn_shift = p["bn_beta"] - p["bn_mean"] * bn_scale

    args = (adj, pool, x,
            p["prelin_w"], p["prelin_b"],
            p["conv1_w"], p["conv1_b"],
            p["lin_hh1_w"], p["lin_hh1_b"],
            p["conv2_w"], p["conv2_b"],
            p["lin_hh2_w"], p["lin_hh2_b"],
            p["conv3_w"], p["conv3_b"],
            p["lin_oo_w"], p["lin_oo_b"],
            p["lin_oh_w"], p["lin_oh_b"],
            bn_scale, bn_shift,
            p["lin_h1_w"], p["lin_h1_b"])

    out_pad = pl.pallas_call(
        _fused_sage_lut_kernel,
        grid=(1,),
        in_specs=[pl.BlockSpec(a.shape, lambda i: (0, 0)) for a in args],
        out_specs=pl.BlockSpec((num_graphs, LANE), lambda i: (0, 0)),
        out_shape=jax.ShapeDtypeStruct((num_graphs, LANE), jnp.float32),
        compiler_params=pltpu.CompilerParams(
            dimension_semantics=("arbitrary",)),
    )(*args)

    return out_pad[:, :1]  # (num_graphs, 1)


# ---------------------------------- main --------------------------------------

if __name__ == "__main__":
    in_channels, hidden, out_channels = 8, 32, 16
    num_nodes, num_edges, num_graphs = 16, 48, 2

    key = jax.random.PRNGKey(0)
    kx, ke = jax.random.split(key)
    x = jax.random.normal(kx, (num_nodes, in_channels), jnp.float32)
    edge_index = jax.random.randint(ke, (2, num_edges), 0, num_nodes, jnp.int32)
    batch = jnp.concatenate([
        jnp.zeros((num_nodes // 2,), jnp.int32),
        jnp.ones((num_nodes - num_nodes // 2,), jnp.int32),
    ])

    params = init_params(in_channels, hidden, out_channels)
    out = sage_lut_forward(params, x, edge_index, batch, num_graphs)
    out = jax.block_until_ready(out)

    assert out.shape == (num_graphs, 1)
    assert bool(jnp.all(jnp.isfinite(out)))
    print("KERNEL_OK")
</pallas_src>

<mosaic_0001>
module attributes {stable_mosaic.version = 11 : i64} {
  func.func @_fused_sage_lut_kernel(%arg0: i32, %arg1: memref<16x16xf32, #tpu.memory_space<vmem>>, %arg2: memref<2x16xf32, #tpu.memory_space<vmem>>, %arg3: memref<16x8xf32, #tpu.memory_space<vmem>>, %arg4: memref<8x32xf32, #tpu.memory_space<vmem>>, %arg5: memref<1x32xf32, #tpu.memory_space<vmem>>, %arg6: memref<64x32xf32, #tpu.memory_space<vmem>>, %arg7: memref<1x32xf32, #tpu.memory_space<vmem>>, %arg8: memref<32x32xf32, #tpu.memory_space<vmem>>, %arg9: memref<1x32xf32, #tpu.memory_space<vmem>>, %arg10: memref<64x32xf32, #tpu.memory_space<vmem>>, %arg11: memref<1x32xf32, #tpu.memory_space<vmem>>, %arg12: memref<32x32xf32, #tpu.memory_space<vmem>>, %arg13: memref<1x32xf32, #tpu.memory_space<vmem>>, %arg14: memref<64x16xf32, #tpu.memory_space<vmem>>, %arg15: memref<1x16xf32, #tpu.memory_space<vmem>>, %arg16: memref<16x16xf32, #tpu.memory_space<vmem>>, %arg17: memref<1x16xf32, #tpu.memory_space<vmem>>, %arg18: memref<16x32xf32, #tpu.memory_space<vmem>>, %arg19: memref<1x32xf32, #tpu.memory_space<vmem>>, %arg20: memref<1x32xf32, #tpu.memory_space<vmem>>, %arg21: memref<1x32xf32, #tpu.memory_space<vmem>>, %arg22: memref<32x128xf32, #tpu.memory_space<vmem>>, %arg23: memref<1x128xf32, #tpu.memory_space<vmem>>, %arg24: memref<2x128xf32, #tpu.memory_space<vmem>>) attributes {dimension_semantics = [#tpu.dimension_semantics<arbitrary>], iteration_bounds = array<i64: 1>, scalar_prefetch = 0 : i64, scratch_operands = 0 : i64, tpu.core_type = #tpu.core_type<tc>, window_params = [{pipeline_mode = #tpu.pipeline_mode<synchronous>, transform_indices = @transform_0, window_bounds = array<i64: 16, 16>}, {pipeline_mode = #tpu.pipeline_mode<synchronous>, transform_indices = @transform_1, window_bounds = array<i64: 2, 16>}, {pipeline_mode = #tpu.pipeline_mode<synchronous>, transform_indices = @transform_2, window_bounds = array<i64: 16, 8>}, {pipeline_mode = #tpu.pipeline_mode<synchronous>, transform_indices = @transform_3, window_bounds = array<i64: 8, 32>}, {pipeline_mode = #tpu.pipeline_mode<synchronous>, transform_indices = @transform_4, window_bounds = array<i64: 1, 32>}, {pipeline_mode = #tpu.pipeline_mode<synchronous>, transform_indices = @transform_5, window_bounds = array<i64: 64, 32>}, {pipeline_mode = #tpu.pipeline_mode<synchronous>, transform_indices = @transform_6, window_bounds = array<i64: 1, 32>}, {pipeline_mode = #tpu.pipeline_mode<synchronous>, transform_indices = @transform_7, window_bounds = array<i64: 32, 32>}, {pipeline_mode = #tpu.pipeline_mode<synchronous>, transform_indices = @transform_8, window_bounds = array<i64: 1, 32>}, {pipeline_mode = #tpu.pipeline_mode<synchronous>, transform_indices = @transform_9, window_bounds = array<i64: 64, 32>}, {pipeline_mode = #tpu.pipeline_mode<synchronous>, transform_indices = @transform_10, window_bounds = array<i64: 1, 32>}, {pipeline_mode = #tpu.pipeline_mode<synchronous>, transform_indices = @transform_11, window_bounds = array<i64: 32, 32>}, {pipeline_mode = #tpu.pipeline_mode<synchronous>, transform_indices = @transform_12, window_bounds = array<i64: 1, 32>}, {pipeline_mode = #tpu.pipeline_mode<synchronous>, transform_indices = @transform_13, window_bounds = array<i64: 64, 16>}, {pipeline_mode = #tpu.pipeline_mode<synchronous>, transform_indices = @transform_14, window_bounds = array<i64: 1, 16>}, {pipeline_mode = #tpu.pipeline_mode<synchronous>, transform_indices = @transform_15, window_bounds = array<i64: 16, 16>}, {pipeline_mode = #tpu.pipeline_mode<synchronous>, transform_indices = @transform_16, window_bounds = array<i64: 1, 16>}, {pipeline_mode = #tpu.pipeline_mode<synchronous>, transform_indices = @transform_17, window_bounds = array<i64: 16, 32>}, {pipeline_mode = #tpu.pipeline_mode<synchronous>, transform_indices = @transform_18, window_bounds = array<i64: 1, 32>}, {pipeline_mode = #tpu.pipeline_mode<synchronous>, transform_indices = @transform_19, window_bounds = array<i64: 1, 32>}, {pipeline_mode = #tpu.pipeline_mode<synchronous>, transform_indices = @transform_20, window_bounds = array<i64: 1, 32>}, {pipeline_mode = #tpu.pipeline_mode<synchronous>, transform_indices = @transform_21, window_bounds = array<i64: 32, 128>}, {pipeline_mode = #tpu.pipeline_mode<synchronous>, transform_indices = @transform_22, window_bounds = array<i64: 1, 128>}, {pipeline_mode = #tpu.pipeline_mode<synchronous>, transform_indices = @transform_23, window_bounds = array<i64: 2, 128>}]} {
    %c0 = arith.constant 0 : index
    %c0_0 = arith.constant 0 : index
    %0 = vector.load %arg1[%c0, %c0_0] : memref<16x16xf32, #tpu.memory_space<vmem>>, vector<16x16xf32>
    %c0_1 = arith.constant 0 : index
    %c0_2 = arith.constant 0 : index
    %1 = vector.load %arg3[%c0_1, %c0_2] : memref<16x8xf32, #tpu.memory_space<vmem>>, vector<16x8xf32>
    %c0_3 = arith.constant 0 : index
    %c0_4 = arith.constant 0 : index
    %2 = vector.load %arg4[%c0_3, %c0_4] : memref<8x32xf32, #tpu.memory_space<vmem>>, vector<8x32xf32>
    %cst = arith.constant dense<0.000000e+00> : vector<16x32xf32>
    %3 = tpu.matmul %1, %2, %cst {dimension_numbers = #tpu.dot_dimension_numbers<[1], [0], [0], [1], [0, 0, 1, 1], [], []>} : vector<16x8xf32>, vector<8x32xf32>, vector<16x32xf32> -> vector<16x32xf32>
    %c0_5 = arith.constant 0 : index
    %c0_6 = arith.constant 0 : index
    %4 = vector.load %arg5[%c0_5, %c0_6] : memref<1x32xf32, #tpu.memory_space<vmem>>, vector<1x32xf32>
    %5 = vector.broadcast %4 : vector<1x32xf32> to vector<16x32xf32>
    %6 = arith.addf %3, %5 : vector<16x32xf32>
    %cst_7 = arith.constant dense<0.000000e+00> : vector<16x32xf32>
    %7 = tpu.matmul %0, %6, %cst_7 {dimension_numbers = #tpu.dot_dimension_numbers<[1], [0], [0], [1], [0, 0, 1, 1], [], []>} : vector<16x16xf32>, vector<16x32xf32>, vector<16x32xf32> -> vector<16x32xf32>
    %8 = tpu.concatenate %7, %6 in 1 : vector<16x32xf32>, vector<16x32xf32> -> vector<16x64xf32>
    %c0_8 = arith.constant 0 : index
    %c0_9 = arith.constant 0 : index
    %9 = vector.load %arg6[%c0_8, %c0_9] : memref<64x32xf32, #tpu.memory_space<vmem>>, vector<64x32xf32>
    %cst_10 = arith.constant dense<0.000000e+00> : vector<16x32xf32>
    %10 = tpu.matmul %8, %9, %cst_10 {dimension_numbers = #tpu.dot_dimension_numbers<[1], [0], [0], [1], [0, 0, 1, 1], [], []>} : vector<16x64xf32>, vector<64x32xf32>, vector<16x32xf32> -> vector<16x32xf32>
    %c0_11 = arith.constant 0 : index
    %c0_12 = arith.constant 0 : index
    %11 = vector.load %arg7[%c0_11, %c0_12] : memref<1x32xf32, #tpu.memory_space<vmem>>, vector<1x32xf32>
    %12 = vector.broadcast %11 : vector<1x32xf32> to vector<16x32xf32>
    %13 = arith.addf %10, %12 : vector<16x32xf32>
    %cst_13 = arith.constant 0.000000e+00 : f32
    %14 = vector.broadcast %cst_13 : f32 to vector<16x32xf32>
    %15 = arith.maximumf %13, %14 : vector<16x32xf32>
    %c0_14 = arith.constant 0 : index
    %c0_15 = arith.constant 0 : index
    %16 = vector.load %arg8[%c0_14, %c0_15] : memref<32x32xf32, #tpu.memory_space<vmem>>, vector<32x32xf32>
    %cst_16 = arith.constant dense<0.000000e+00> : vector<16x32xf32>
    %17 = tpu.matmul %15, %16, %cst_16 {dimension_numbers = #tpu.dot_dimension_numbers<[1], [0], [0], [1], [0, 0, 1, 1], [], []>} : vector<16x32xf32>, vector<32x32xf32>, vector<16x32xf32> -> vector<16x32xf32>
    %c0_17 = arith.constant 0 : index
    %c0_18 = arith.constant 0 : index
    %18 = vector.load %arg9[%c0_17, %c0_18] : memref<1x32xf32, #tpu.memory_space<vmem>>, vector<1x32xf32>
    %19 = vector.broadcast %18 : vector<1x32xf32> to vector<16x32xf32>
    %20 = arith.addf %17, %19 : vector<16x32xf32>
    %cst_19 = arith.constant 0.000000e+00 : f32
    %21 = vector.broadcast %cst_19 : f32 to vector<16x32xf32>
    %22 = arith.cmpf ogt, %20, %21 : vector<16x32xf32>
    %cst_20 = arith.constant 0.00999999977 : f32
    %23 = vector.broadcast %cst_20 : f32 to vector<16x32xf32>
    %24 = arith.mulf %23, %20 : vector<16x32xf32>
    %25 = arith.select %22, %20, %24 : vector<16x32xi1>, vector<16x32xf32>
    %cst_21 = arith.constant dense<0.000000e+00> : vector<16x32xf32>
    %26 = tpu.matmul %0, %25, %cst_21 {dimension_numbers = #tpu.dot_dimension_numbers<[1], [0], [0], [1], [0, 0, 1, 1], [], []>} : vector<16x16xf32>, vector<16x32xf32>, vector<16x32xf32> -> vector<16x32xf32>
    %27 = tpu.concatenate %26, %25 in 1 : vector<16x32xf32>, vector<16x32xf32> -> vector<16x64xf32>
    %c0_22 = arith.constant 0 : index
    %c0_23 = arith.constant 0 : index
    %28 = vector.load %arg10[%c0_22, %c0_23] : memref<64x32xf32, #tpu.memory_space<vmem>>, vector<64x32xf32>
    %cst_24 = arith.constant dense<0.000000e+00> : vector<16x32xf32>
    %29 = tpu.matmul %27, %28, %cst_24 {dimension_numbers = #tpu.dot_dimension_numbers<[1], [0], [0], [1], [0, 0, 1, 1], [], []>} : vector<16x64xf32>, vector<64x32xf32>, vector<16x32xf32> -> vector<16x32xf32>
    %c0_25 = arith.constant 0 : index
    %c0_26 = arith.constant 0 : index
    %30 = vector.load %arg11[%c0_25, %c0_26] : memref<1x32xf32, #tpu.memory_space<vmem>>, vector<1x32xf32>
    %31 = vector.broadcast %30 : vector<1x32xf32> to vector<16x32xf32>
    %32 = arith.addf %29, %31 : vector<16x32xf32>
    %cst_27 = arith.constant 0.000000e+00 : f32
    %33 = vector.broadcast %cst_27 : f32 to vector<16x32xf32>
    %34 = arith.maximumf %32, %33 : vector<16x32xf32>
    %c0_28 = arith.constant 0 : index
    %c0_29 = arith.constant 0 : index
    %35 = vector.load %arg12[%c0_28, %c0_29] : memref<32x32xf32, #tpu.memory_space<vmem>>, vector<32x32xf32>
    %cst_30 = arith.constant dense<0.000000e+00> : vector<16x32xf32>
    %36 = tpu.matmul %34, %35, %cst_30 {dimension_numbers = #tpu.dot_dimension_numbers<[1], [0], [0], [1], [0, 0, 1, 1], [], []>} : vector<16x32xf32>, vector<32x32xf32>, vector<16x32xf32> -> vector<16x32xf32>
    %c0_31 = arith.constant 0 : index
    %c0_32 = arith.constant 0 : index
    %37 = vector.load %arg13[%c0_31, %c0_32] : memref<1x32xf32, #tpu.memory_space<vmem>>, vector<1x32xf32>
    %38 = vector.broadcast %37 : vector<1x32xf32> to vector<16x32xf32>
    %39 = arith.addf %36, %38 : vector<16x32xf32>
    %cst_33 = arith.constant 0.000000e+00 : f32
    %40 = vector.broadcast %cst_33 : f32 to vector<16x32xf32>
    %41 = arith.cmpf ogt, %39, %40 : vector<16x32xf32>
    %cst_34 = arith.constant 0.00999999977 : f32
    %42 = vector.broadcast %cst_34 : f32 to vector<16x32xf32>
    %43 = arith.mulf %42, %39 : vector<16x32xf32>
    %44 = arith.select %41, %39, %43 : vector<16x32xi1>, vector<16x32xf32>
    %cst_35 = arith.constant dense<0.000000e+00> : vector<16x32xf32>
    %45 = tpu.matmul %0, %44, %cst_35 {dimension_numbers = #tpu.dot_dimension_numbers<[1], [0], [0], [1], [0, 0, 1, 1], [], []>} : vector<16x16xf32>, vector<16x32xf32>, vector<16x32xf32> -> vector<16x32xf32>
    %46 = tpu.concatenate %45, %44 in 1 : vector<16x32xf32>, vector<16x32xf32> -> vector<16x64xf32>
    %c0_36 = arith.constant 0 : index
    %c0_37 = arith.constant 0 : index
    %47 = vector.load %arg14[%c0_36, %c0_37] : memref<64x16xf32, #tpu.memory_space<vmem>>, vector<64x16xf32>
    %cst_38 = arith.constant dense<0.000000e+00> : vector<16x16xf32>
    %48 = tpu.matmul %46, %47, %cst_38 {dimension_numbers = #tpu.dot_dimension_numbers<[1], [0], [0], [1], [0, 0, 1, 1], [], []>} : vector<16x64xf32>, vector<64x16xf32>, vector<16x16xf32> -> vector<16x16xf32>
    %c0_39 = arith.constant 0 : index
    %c0_40 = arith.constant 0 : index
    %49 = vector.load %arg15[%c0_39, %c0_40] : memref<1x16xf32, #tpu.memory_space<vmem>>, vector<1x16xf32>
    %50 = vector.broadcast %49 : vector<1x16xf32> to vector<16x16xf32>
    %51 = arith.addf %48, %50 : vector<16x16xf32>
    %cst_41 = arith.constant 0.000000e+00 : f32
    %52 = vector.broadcast %cst_41 : f32 to vector<16x16xf32>
    %53 = arith.maximumf %51, %52 : vector<16x16xf32>
    %c0_42 = arith.constant 0 : index
    %c0_43 = arith.constant 0 : index
    %54 = vector.load %arg16[%c0_42, %c0_43] : memref<16x16xf32, #tpu.memory_space<vmem>>, vector<16x16xf32>
    %cst_44 = arith.constant dense<0.000000e+00> : vector<16x16xf32>
    %55 = tpu.matmul %53, %54, %cst_44 {dimension_numbers = #tpu.dot_dimension_numbers<[1], [0], [0], [1], [0, 0, 1, 1], [], []>} : vector<16x16xf32>, vector<16x16xf32>, vector<16x16xf32> -> vector<16x16xf32>
    %c0_45 = arith.constant 0 : index
    %c0_46 = arith.constant 0 : index
    %56 = vector.load %arg17[%c0_45, %c0_46] : memref<1x16xf32, #tpu.memory_space<vmem>>, vector<1x16xf32>
    %57 = vector.broadcast %56 : vector<1x16xf32> to vector<16x16xf32>
    %58 = arith.addf %55, %57 : vector<16x16xf32>
    %cst_47 = arith.constant 0.000000e+00 : f32
    %59 = vector.broadcast %cst_47 : f32 to vector<16x16xf32>
    %60 = arith.cmpf ogt, %58, %59 : vector<16x16xf32>
    %cst_48 = arith.constant 0.00999999977 : f32
    %61 = vector.broadcast %cst_48 : f32 to vector<16x16xf32>
    %62 = arith.mulf %61, %58 : vector<16x16xf32>
    %63 = arith.select %60, %58, %62 : vector<16x16xi1>, vector<16x16xf32>
    %c0_49 = arith.constant 0 : index
    %c0_50 = arith.constant 0 : index
    %64 = vector.load %arg2[%c0_49, %c0_50] : memref<2x16xf32, #tpu.memory_space<vmem>>, vector<2x16xf32>
    %cst_51 = arith.constant dense<0.000000e+00> : vector<2x16xf32>
    %65 = tpu.matmul %64, %63, %cst_51 {dimension_numbers = #tpu.dot_dimension_numbers<[1], [0], [0], [1], [0, 0, 1, 1], [], []>} : vector<2x16xf32>, vector<16x16xf32>, vector<2x16xf32> -> vector<2x16xf32>
    %c0_52 = arith.constant 0 : index
    %c0_53 = arith.constant 0 : index
    %66 = vector.load %arg18[%c0_52, %c0_53] : memref<16x32xf32, #tpu.memory_space<vmem>>, vector<16x32xf32>
    %cst_54 = arith.constant dense<0.000000e+00> : vector<2x32xf32>
    %67 = tpu.matmul %65, %66, %cst_54 {dimension_numbers = #tpu.dot_dimension_numbers<[1], [0], [0], [1], [0, 0, 1, 1], [], []>} : vector<2x16xf32>, vector<16x32xf32>, vector<2x32xf32> -> vector<2x32xf32>
    %c0_55 = arith.constant 0 : index
    %c0_56 = arith.constant 0 : index
    %68 = vector.load %arg19[%c0_55, %c0_56] : memref<1x32xf32, #tpu.memory_space<vmem>>, vector<1x32xf32>
    %69 = vector.broadcast %68 : vector<1x32xf32> to vector<2x32xf32>
    %70 = arith.addf %67, %69 : vector<2x32xf32>
    %c0_57 = arith.constant 0 : index
    %c0_58 = arith.constant 0 : index
    %71 = vector.load %arg20[%c0_57, %c0_58] : memref<1x32xf32, #tpu.memory_space<vmem>>, vector<1x32xf32>
    %72 = vector.broadcast %71 : vector<1x32xf32> to vector<2x32xf32>
    %73 = arith.mulf %70, %72 : vector<2x32xf32>
    %c0_59 = arith.constant 0 : index
    %c0_60 = arith.constant 0 : index
    %74 = vector.load %arg21[%c0_59, %c0_60] : memref<1x32xf32, #tpu.memory_space<vmem>>, vector<1x32xf32>
    %75 = vector.broadcast %74 : vector<1x32xf32> to vector<2x32xf32>
    %76 = arith.addf %73, %75 : vector<2x32xf32>
    %cst_61 = arith.constant 0.000000e+00 : f32
    %77 = vector.broadcast %cst_61 : f32 to vector<2x32xf32>
    %78 = arith.cmpf ogt, %76, %77 : vector<2x32xf32>
    %cst_62 = arith.constant 0.00999999977 : f32
    %79 = vector.broadcast %cst_62 : f32 to vector<2x32xf32>
    %80 = arith.mulf %79, %76 : vector<2x32xf32>
    %81 = arith.select %78, %76, %80 : vector<2x32xi1>, vector<2x32xf32>
    %c0_63 = arith.constant 0 : index
    %c0_64 = arith.constant 0 : index
    %82 = vector.load %arg22[%c0_63, %c0_64] : memref<32x128xf32, #tpu.memory_space<vmem>>, vector<32x128xf32>
    %cst_65 = arith.constant dense<0.000000e+00> : vector<2x128xf32>
    %83 = tpu.matmul %81, %82, %cst_65 {dimension_numbers = #tpu.dot_dimension_numbers<[1], [0], [0], [1], [0, 0, 1, 1], [], []>} : vector<2x32xf32>, vector<32x128xf32>, vector<2x128xf32> -> vector<2x128xf32>
    %c0_66 = arith.constant 0 : index
    %c0_67 = arith.constant 0 : index
    %84 = vector.load %arg23[%c0_66, %c0_67] : memref<1x128xf32, #tpu.memory_space<vmem>>, vector<1x128xf32>
    %85 = vector.broadcast %84 : vector<1x128xf32> to vector<2x128xf32>
    %86 = arith.addf %83, %85 : vector<2x128xf32>
    %cst_68 = arith.constant 0.000000e+00 : f32
    %87 = vector.broadcast %cst_68 : f32 to vector<2x128xf32>
    %88 = arith.maximumf %86, %87 : vector<2x128xf32>
    %c0_69 = arith.constant 0 : index
    %c0_70 = arith.constant 0 : index
    %89 = vector.load %arg24[%c0_69, %c0_70] : memref<2x128xf32, #tpu.memory_space<vmem>>, vector<2x128xf32>
    tpu.vector_store %arg24[%c0_69, %c0_70], %88 {strides = array<i32>} : memref<2x128xf32, #tpu.memory_space<vmem>>, vector<2x128xf32>,
    return
  }
  func.func @transform_0(%arg0: i32) -> (i32, i32) {
    %c0_i32 = arith.constant 0 : i32
    %c0_i32_0 = arith.constant 0 : i32
    %c0_i32_1 = arith.constant 0 : i32
    return %c0_i32, %c0_i32_0 : i32, i32
  }
  func.func @transform_1(%arg0: i32) -> (i32, i32) {
    %c0_i32 = arith.constant 0 : i32
    %c0_i32_0 = arith.constant 0 : i32
    %c0_i32_1 = arith.constant 0 : i32
    return %c0_i32, %c0_i32_0 : i32, i32
  }
  func.func @transform_2(%arg0: i32) -> (i32, i32) {
    %c0_i32 = arith.constant 0 : i32
    %c0_i32_0 = arith.constant 0 : i32
    %c0_i32_1 = arith.constant 0 : i32
    return %c0_i32, %c0_i32_0 : i32, i32
  }
  func.func @transform_3(%arg0: i32) -> (i32, i32) {
    %c0_i32 = arith.constant 0 : i32
    %c0_i32_0 = arith.constant 0 : i32
    %c0_i32_1 = arith.constant 0 : i32
    return %c0_i32, %c0_i32_0 : i32, i32
  }
  func.func @transform_4(%arg0: i32) -> (i32, i32) {
    %c0_i32 = arith.constant 0 : i32
    %c0_i32_0 = arith.constant 0 : i32
    %c0_i32_1 = arith.constant 0 : i32
    return %c0_i32, %c0_i32_0 : i32, i32
  }
  func.func @transform_5(%arg0: i32) -> (i32, i32) {
    %c0_i32 = arith.constant 0 : i32
    %c0_i32_0 = arith.constant 0 : i32
    %c0_i32_1 = arith.constant 0 : i32
    return %c0_i32, %c0_i32_0 : i32, i32
  }
  func.func @transform_6(%arg0: i32) -> (i32, i32) {
    %c0_i32 = arith.constant 0 : i32
    %c0_i32_0 = arith.constant 0 : i32
    %c0_i32_1 = arith.constant 0 : i32
    return %c0_i32, %c0_i32_0 : i32, i32
  }
  func.func @transform_7(%arg0: i32) -> (i32, i32) {
    %c0_i32 = arith.constant 0 : i32
    %c0_i32_0 = arith.constant 0 : i32
    %c0_i32_1 = arith.constant 0 : i32
    return %c0_i32, %c0_i32_0 : i32, i32
  }
  func.func @transform_8(%arg0: i32) -> (i32, i32) {
    %c0_i32 = arith.constant 0 : i32
    %c0_i32_0 = arith.constant 0 : i32
    %c0_i32_1 = arith.constant 0 : i32
    return %c0_i32, %c0_i32_0 : i32, i32
  }
  func.func @transform_9(%arg0: i32) -> (i32, i32) {
    %c0_i32 = arith.constant 0 : i32
    %c0_i32_0 = arith.constant 0 : i32
    %c0_i32_1 = arith.constant 0 : i32
    return %c0_i32, %c0_i32_0 : i32, i32
  }
  func.func @transform_10(%arg0: i32) -> (i32, i32) {
    %c0_i32 = arith.constant 0 : i32
    %c0_i32_0 = arith.constant 0 : i32
    %c0_i32_1 = arith.constant 0 : i32
    return %c0_i32, %c0_i32_0 : i32, i32
  }
  func.func @transform_11(%arg0: i32) -> (i32, i32) {
    %c0_i32 = arith.constant 0 : i32
    %c0_i32_0 = arith.constant 0 : i32
    %c0_i32_1 = arith.constant 0 : i32
    return %c0_i32, %c0_i32_0 : i32, i32
  }
  func.func @transform_12(%arg0: i32) -> (i32, i32) {
    %c0_i32 = arith.constant 0 : i32
    %c0_i32_0 = arith.constant 0 : i32
    %c0_i32_1 = arith.constant 0 : i32
    return %c0_i32, %c0_i32_0 : i32, i32
  }
  func.func @transform_13(%arg0: i32) -> (i32, i32) {
    %c0_i32 = arith.constant 0 : i32
    %c0_i32_0 = arith.constant 0 : i32
    %c0_i32_1 = arith.constant 0 : i32
    return %c0_i32, %c0_i32_0 : i32, i32
  }
  func.func @transform_14(%arg0: i32) -> (i32, i32) {
    %c0_i32 = arith.constant 0 : i32
    %c0_i32_0 = arith.constant 0 : i32
    %c0_i32_1 = arith.constant 0 : i32
    return %c0_i32, %c0_i32_0 : i32, i32
  }
  func.func @transform_15(%arg0: i32) -> (i32, i32) {
    %c0_i32 = arith.constant 0 : i32
    %c0_i32_0 = arith.constant 0 : i32
    %c0_i32_1 = arith.constant 0 : i32
    return %c0_i32, %c0_i32_0 : i32, i32
  }
  func.func @transform_16(%arg0: i32) -> (i32, i32) {
    %c0_i32 = arith.constant 0 : i32
    %c0_i32_0 = arith.constant 0 : i32
    %c0_i32_1 = arith.constant 0 : i32
    return %c0_i32, %c0_i32_0 : i32, i32
  }
  func.func @transform_17(%arg0: i32) -> (i32, i32) {
    %c0_i32 = arith.constant 0 : i32
    %c0_i32_0 = arith.constant 0 : i32
    %c0_i32_1 = arith.constant 0 : i32
    return %c0_i32, %c0_i32_0 : i32, i32
  }
  func.func @transform_18(%arg0: i32) -> (i32, i32) {
    %c0_i32 = arith.constant 0 : i32
    %c0_i32_0 = arith.constant 0 : i32
    %c0_i32_1 = arith.constant 0 : i32
    return %c0_i32, %c0_i32_0 : i32, i32
  }
  func.func @transform_19(%arg0: i32) -> (i32, i32) {
    %c0_i32 = arith.constant 0 : i32
    %c0_i32_0 = arith.constant 0 : i32
    %c0_i32_1 = arith.constant 0 : i32
    return %c0_i32, %c0_i32_0 : i32, i32
  }
  func.func @transform_20(%arg0: i32) -> (i32, i32) {
    %c0_i32 = arith.constant 0 : i32
    %c0_i32_0 = arith.constant 0 : i32
    %c0_i32_1 = arith.constant 0 : i32
    return %c0_i32, %c0_i32_0 : i32, i32
  }
  func.func @transform_21(%arg0: i32) -> (i32, i32) {
    %c0_i32 = arith.constant 0 : i32
    %c0_i32_0 = arith.constant 0 : i32
    %c0_i32_1 = arith.constant 0 : i32
    return %c0_i32, %c0_i32_0 : i32, i32
  }
  func.func @transform_22(%arg0: i32) -> (i32, i32) {
    %c0_i32 = arith.constant 0 : i32
    %c0_i32_0 = arith.constant 0 : i32
    %c0_i32_1 = arith.constant 0 : i32
    return %c0_i32, %c0_i32_0 : i32, i32
  }
  func.func @transform_23(%arg0: i32) -> (i32, i32) {
    %c0_i32 = arith.constant 0 : i32
    %c0_i32_0 = arith.constant 0 : i32
    %c0_i32_1 = arith.constant 0 : i32
    return %c0_i32, %c0_i32_0 : i32, i32
  }
}

</mosaic_0001>

<llo_original>
// kernel: sage_lut_forward.1
$region0: #{sage_lut_forward.1}
  #allocation0 [shape = 'u32[]', space=smem, size = 0x4, offset = 0x4, fixed_abs, tag = 'smem constant byte address 0x4 - core index']
  #allocation1 [shape = 'u32[144,128]{1,0:T(1,128)}', space=vmem, size = 0x12000, scoped, tag = 'internal scratch']
  %s0 = inlined_call_operand.vmem [shape: f32[16,16], index: 0, kind: input, shape index: {}]
  %s1 = inlined_call_operand.vmem [shape: f32[2,16], index: 1, kind: input, shape index: {}]
  %s2 = inlined_call_operand.vmem [shape: f32[16,8], index: 2, kind: input, shape index: {}]
  %s3 = inlined_call_operand.vmem [shape: f32[8,32], index: 3, kind: input, shape index: {}]
  %s4 = inlined_call_operand.vmem [shape: f32[1,32], index: 4, kind: input, shape index: {}]
  %s5 = inlined_call_operand.vmem [shape: f32[64,32], index: 5, kind: input, shape index: {}]
  %s6 = inlined_call_operand.vmem [shape: f32[1,32], index: 6, kind: input, shape index: {}]
  %s7 = inlined_call_operand.vmem [shape: f32[32,32], index: 7, kind: input, shape index: {}]
  %s8 = inlined_call_operand.vmem [shape: f32[1,32], index: 8, kind: input, shape index: {}]
  %s9 = inlined_call_operand.vmem [shape: f32[64,32], index: 9, kind: input, shape index: {}]
  %s10 = inlined_call_operand.vmem [shape: f32[1,32], index: 10, kind: input, shape index: {}]
  %s11 = inlined_call_operand.vmem [shape: f32[32,32], index: 11, kind: input, shape index: {}]
  %s12 = inlined_call_operand.vmem [shape: f32[1,32], index: 12, kind: input, shape index: {}]
  %s13 = inlined_call_operand.vmem [shape: f32[64,16], index: 13, kind: input, shape index: {}]
  %s14 = inlined_call_operand.vmem [shape: f32[1,16], index: 14, kind: input, shape index: {}]
  %s15 = inlined_call_operand.vmem [shape: f32[16,16], index: 15, kind: input, shape index: {}]
  %s16 = inlined_call_operand.vmem [shape: f32[1,16], index: 16, kind: input, shape index: {}]
  %s17 = inlined_call_operand.vmem [shape: f32[16,32], index: 17, kind: input, shape index: {}]
  %s18 = inlined_call_operand.vmem [shape: f32[1,32], index: 18, kind: input, shape index: {}]
  %s19 = inlined_call_operand.vmem [shape: f32[1,32], index: 19, kind: input, shape index: {}]
  %s20 = inlined_call_operand.vmem [shape: f32[1,32], index: 20, kind: input, shape index: {}]
  %s21 = inlined_call_operand.vmem [shape: f32[32,128], index: 21, kind: input, shape index: {}]
  %s22 = inlined_call_operand.vmem [shape: f32[1,128], index: 22, kind: input, shape index: {}]
  %s23 = inlined_call_operand.vmem [shape: f32[2,128], index: 23, kind: output, shape index: {}]
  %s24 = sld [smem:[#allocation0]]
  $region102: #{sage_lut_forward.1} parent=0
    _
  %s26 = ssub.s32 1, %s24
  %s27 = scalar_select 0, %s26, %s24
  // Predicated region
  $region2: #{sage_lut_forward.1} parent=0 // pred_check
    _
  $region3: #{sage_lut_forward.1} parent=0 // pred_check_branch
    %29 = sbr.rel (0) target = $region5
  $region4: #{sage_lut_forward.1} parent=0 // pred_region
    _
  $region5: #{sage_lut_forward.1} parent=0 // pred_fallthru
    _
  // Predicated region
  $region6: #{sage_lut_forward.1} parent=0 // pred_check
    _
  $region7: #{sage_lut_forward.1} parent=0 // pred_check_branch
    %31 = sbr.rel (0) target = $region9
  $region8: #{sage_lut_forward.1} parent=0 // pred_region
    _
  $region9: #{sage_lut_forward.1} parent=0 // pred_fallthru
    _
  // Predicated region
  $region10: #{sage_lut_forward.1} parent=0 // pred_check
    _
  $region11: #{sage_lut_forward.1} parent=0 // pred_check_branch
    %33 = sbr.rel (0) target = $region13
  $region12: #{sage_lut_forward.1} parent=0 // pred_region
    _
  $region13: #{sage_lut_forward.1} parent=0 // pred_fallthru
    _
  // Predicated region
  $region14: #{sage_lut_forward.1} parent=0 // pred_check
    _
  $region15: #{sage_lut_forward.1} parent=0 // pred_check_branch
    %35 = sbr.rel (0) target = $region17
  $region16: #{sage_lut_forward.1} parent=0 // pred_region
    _
  $region17: #{sage_lut_forward.1} parent=0 // pred_fallthru
    _
  // Predicated region
  $region18: #{sage_lut_forward.1} parent=0 // pred_check
    _
  $region19: #{sage_lut_forward.1} parent=0 // pred_check_branch
    %37 = sbr.rel (0) target = $region21
  $region20: #{sage_lut_forward.1} parent=0 // pred_region
    _
  $region21: #{sage_lut_forward.1} parent=0 // pred_fallthru
    _
  // Predicated region
  $region22: #{sage_lut_forward.1} parent=0 // pred_check
    _
  $region23: #{sage_lut_forward.1} parent=0 // pred_check_branch
    %39 = sbr.rel (0) target = $region25
  $region24: #{sage_lut_forward.1} parent=0 // pred_region
    _
  $region25: #{sage_lut_forward.1} parent=0 // pred_fallthru
    _
  // Predicated region
  $region26: #{sage_lut_forward.1} parent=0 // pred_check
    _
  $region27: #{sage_lut_forward.1} parent=0 // pred_check_branch
    %41 = sbr.rel (0) target = $region29
  $region28: #{sage_lut_forward.1} parent=0 // pred_region
    _
  $region29: #{sage_lut_forward.1} parent=0 // pred_fallthru
    _
  // Predicated region
  $region30: #{sage_lut_forward.1} parent=0 // pred_check
    _
  $region31: #{sage_lut_forward.1} parent=0 // pred_check_branch
    %43 = sbr.rel (0) target = $region33
  $region32: #{sage_lut_forward.1} parent=0 // pred_region
    _
  $region33: #{sage_lut_forward.1} parent=0 // pred_fallthru
    _
  // Predicated region
  $region34: #{sage_lut_forward.1} parent=0 // pred_check
    _
  $region35: #{sage_lut_forward.1} parent=0 // pred_check_branch
    %45 = sbr.rel (0) target = $region37
  $region36: #{sage_lut_forward.1} parent=0 // pred_region
    _
  $region37: #{sage_lut_forward.1} parent=0 // pred_fallthru
    _
  // Predicated region
  $region38: #{sage_lut_forward.1} parent=0 // pred_check
    _
  $region39: #{sage_lut_forward.1} parent=0 // pred_check_branch
    %47 = sbr.rel (0) target = $region41
  $region40: #{sage_lut_forward.1} parent=0 // pred_region
    _
  $region41: #{sage_lut_forward.1} parent=0 // pred_fallthru
    _
  // Predicated region
  $region42: #{sage_lut_forward.1} parent=0 // pred_check
    _
  $region43: #{sage_lut_forward.1} parent=0 // pred_check_branch
    %49 = sbr.rel (0) target = $region45
  $region44: #{sage_lut_forward.1} parent=0 // pred_region
    _
  $region45: #{sage_lut_forward.1} parent=0 // pred_fallthru
    _
  // Predicated region
  $region46: #{sage_lut_forward.1} parent=0 // pred_check
    _
  $region47: #{sage_lut_forward.1} parent=0 // pred_check_branch
    %51 = sbr.rel (0) target = $region49
  $region48: #{sage_lut_forward.1} parent=0 // pred_region
    _
  $region49: #{sage_lut_forward.1} parent=0 // pred_fallthru
    _
  // Predicated region
  $region50: #{sage_lut_forward.1} parent=0 // pred_check
    _
  $region51: #{sage_lut_forward.1} parent=0 // pred_check_branch
    %53 = sbr.rel (0) target = $region53
  $region52: #{sage_lut_forward.1} parent=0 // pred_region
    _
  $region53: #{sage_lut_forward.1} parent=0 // pred_fallthru
    _
  // Predicated region
  $region54: #{sage_lut_forward.1} parent=0 // pred_check
    _
  $region55: #{sage_lut_forward.1} parent=0 // pred_check_branch
    %55 = sbr.rel (0) target = $region57
  $region56: #{sage_lut_forward.1} parent=0 // pred_region
    _
  $region57: #{sage_lut_forward.1} parent=0 // pred_fallthru
    _
  // Predicated region
  $region58: #{sage_lut_forward.1} parent=0 // pred_check
    _
  $region59: #{sage_lut_forward.1} parent=0 // pred_check_branch
    %57 = sbr.rel (0) target = $region61
  $region60: #{sage_lut_forward.1} parent=0 // pred_region
    _
  $region61: #{sage_lut_forward.1} parent=0 // pred_fallthru
    _
  // Predicated region
  $region62: #{sage_lut_forward.1} parent=0 // pred_check
    _
  $region63: #{sage_lut_forward.1} parent=0 // pred_check_branch
    %59 = sbr.rel (0) target = $region65
  $region64: #{sage_lut_forward.1} parent=0 // pred_region
    _
  $region65: #{sage_lut_forward.1} parent=0 // pred_fallthru
    _
  // Predicated region
  $region66: #{sage_lut_forward.1} parent=0 // pred_check
    _
  $region67: #{sage_lut_forward.1} parent=0 // pred_check_branch
    %61 = sbr.rel (0) target = $region69
  $region68: #{sage_lut_forward.1} parent=0 // pred_region
    _
  $region69: #{sage_lut_forward.1} parent=0 // pred_fallthru
    _
  // Predicated region
  $region70: #{sage_lut_forward.1} parent=0 // pred_check
    _
  $region71: #{sage_lut_forward.1} parent=0 // pred_check_branch
    %63 = sbr.rel (0) target = $region73
  $region72: #{sage_lut_forward.1} parent=0 // pred_region
    _
  $region73: #{sage_lut_forward.1} parent=0 // pred_fallthru
    _
  // Predicated region
  $region74: #{sage_lut_forward.1} parent=0 // pred_check
    _
  $region75: #{sage_lut_forward.1} parent=0 // pred_check_branch
    %65 = sbr.rel (0) target = $region77
  $region76: #{sage_lut_forward.1} parent=0 // pred_region
    _
  $region77: #{sage_lut_forward.1} parent=0 // pred_fallthru
    _
  // Predicated region
  $region78: #{sage_lut_forward.1} parent=0 // pred_check
    _
  $region79: #{sage_lut_forward.1} parent=0 // pred_check_branch
    %67 = sbr.rel (0) target = $region81
  $region80: #{sage_lut_forward.1} parent=0 // pred_region
    _
  $region81: #{sage_lut_forward.1} parent=0 // pred_fallthru
    _
  // Predicated region
  $region82: #{sage_lut_forward.1} parent=0 // pred_check
    _
  $region83: #{sage_lut_forward.1} parent=0 // pred_check_branch
    %69 = sbr.rel (0) target = $region85
  $region84: #{sage_lut_forward.1} parent=0 // pred_region
    _
  $region85: #{sage_lut_forward.1} parent=0 // pred_fallthru
    _
  // Predicated region
  $region86: #{sage_lut_forward.1} parent=0 // pred_check
    _
  $region87: #{sage_lut_forward.1} parent=0 // pred_check_branch
    %71 = sbr.rel (0) target = $region89
  $region88: #{sage_lut_forward.1} parent=0 // pred_region
    _
  $region89: #{sage_lut_forward.1} parent=0 // pred_fallthru
    _
  // Predicated region
  $region90: #{sage_lut_forward.1} parent=0 // pred_check
    _
  $region91: #{sage_lut_forward.1} parent=0 // pred_check_branch
    %73 = sbr.rel (0) target = $region93
  $region92: #{sage_lut_forward.1} parent=0 // pred_region
    _
  $region93: #{sage_lut_forward.1} parent=0 // pred_fallthru
    _
  %v74 = vld [vmem:[%s0] sm:$0xff]
  %v75 = vld [vmem:[%s0 + $0x8] sm:$0xff]
  %v76 = vld [vmem:[%s2] sm:$0xff]
  %v77 = vld [vmem:[%s2 + $0x8] sm:$0xff]
  %v78 = vld [vmem:[%s3] sm:$0xff]
  %v79 = vld [vmem:[%s4] sm:$0x1]
  %v81 = vlaneseq
  %v82 = vshrl.u32 %v81, 7
  %v83 = vsub.s32 0, %v82
  %v84 = vrot.slane %v79, %v83
  %vm86 = vcmask 64512
  %v88 = vsel %vm86, %v76, 0
  %v91 = vsel %vm86, %v77, 0
  %93 = vmatprep.subr.mxu0 0.0
  %94 = vmatpush1.msra.mxu0 0.0
  %95 = vmatprep.subr.mxu0 0.0
  %96 = vmatpush1.msra.mxu0 0.0
  %97 = vmatprep.subr.mxu0 0.0
  %98 = vmatpush1.msra.mxu0 0.0
  %99 = vmatprep.subr.mxu0 0.0
  %100 = vmatpush1.msra.mxu0 0.0
  %101 = vmatprep.subr.mxu0 0.0
  %102 = vmatpush1.msra.mxu0 0.0
  %103 = vmatprep.subr.mxu0 0.0
  %104 = vmatpush1.msra.mxu0 0.0
  %105 = vmatprep.subr.mxu0 0.0
  %106 = vmatpush1.msra.mxu0 0.0
  %107 = vmatprep.subr.mxu0 0.0
  %108 = vmatpush1.msra.mxu0 0.0
  %109 = vmatprep.subr.mxu0 0.0
  %110 = vmatpush1.msra.mxu0 0.0
  %111 = vmatprep.subr.mxu0 0.0
  %112 = vmatpush1.msra.mxu0 0.0
  %113 = vmatprep.subr.mxu0 0.0
  %114 = vmatpush1.msra.mxu0 0.0
  %115 = vmatprep.subr.mxu0 0.0
  %116 = vmatpush1.msra.mxu0 0.0
  %117 = vmatprep.subr.mxu0 0.0
  %118 = vmatpush1.msra.mxu0 0.0
  %119 = vmatprep.subr.mxu0 0.0
  %120 = vmatpush1.msra.mxu0 0.0
  %121 = vmatprep.subr.mxu0 0.0
  %122 = vmatpush1.msra.mxu0 0.0
  %123 = vmatprep.subr.mxu0 0.0
  %124 = vmatpush1.msra.mxu0 %v78
  %125 = vmatprep.subr.mxu0 0.0
  %126 = vmatpush2.msra.mxu0 0.0
  %127 = vmatprep.subr.mxu0 0.0
  %128 = vmatpush2.msra.mxu0 0.0
  %129 = vmatprep.subr.mxu0 0.0
  %130 = vmatpush2.msra.mxu0 0.0
  %131 = vmatprep.subr.mxu0 0.0
  %132 = vmatpush2.msra.mxu0 0.0
  %133 = vmatprep.subr.mxu0 0.0
  %134 = vmatpush2.msra.mxu0 0.0
  %135 = vmatprep.subr.mxu0 0.0
  %136 = vmatpush2.msra.mxu0 0.0
  %137 = vmatprep.subr.mxu0 0.0
  %138 = vmatpush2.msra.mxu0 0.0
  %139 = vmatprep.subr.mxu0 0.0
  %140 = vmatpush2.msra.mxu0 0.0
  %141 = vmatprep.subr.mxu0 0.0
  %142 = vmatpush2.msra.mxu0 0.0
  %143 = vmatprep.subr.mxu0 0.0
  %144 = vmatpush2.msra.mxu0 0.0
  %145 = vmatprep.subr.mxu0 0.0
  %146 = vmatpush2.msra.mxu0 0.0
  %147 = vmatprep.subr.mxu0 0.0
  %148 = vmatpush2.msra.mxu0 0.0
  %149 = vmatprep.subr.mxu0 0.0
  %150 = vmatpush2.msra.mxu0 0.0
  %151 = vmatprep.subr.mxu0 0.0
  %152 = vmatpush2.msra.mxu0 0.0
  %153 = vmatprep.subr.mxu0 0.0
  %154 = vmatpush2.msra.mxu0 0.0
  %155 = vmatprep.subr.mxu0 0.0
  %156 = vmatpush2.msra.mxu0 0.0
  %157 = vmatprep.mubr.f32.mxu0 0.0
  %158 = vmatmul.mubr.f32.gmra.mxu0 %v88
  %v159 = vpop.f32.mrf.mxu0
  %v160 = vadd.f32 %v84, %v159
  %v161 = vpop.f32.mrf.mxu0
  %162 = vmatprep.mubr.f32.mxu0 0.0
  %163 = vmatmul.mubr.f32.gmra.mxu0 %v91
  %v164 = vpop.f32.mrf.mxu0
  %v165 = vadd.f32 %v84, %v164
  %v166 = vpop.f32.mrf.mxu0
  %167 = vdwg.mxu0
  %vm168 = vcmask 130048
  %v170 = vsel %vm168, %v74, 0
  %v173 = vsel %vm168, %v75, 0
  %175 = vmatprep.subr.mxu0 0.0
  %176 = vmatpush1.msra.mxu0 0.0
  %177 = vmatprep.subr.mxu0 0.0
  %178 = vmatpush1.msra.mxu0 0.0
  %179 = vmatprep.subr.mxu0 0.0
  %180 = vmatpush1.msra.mxu0 0.0
  %181 = vmatprep.subr.mxu0 0.0
  %182 = vmatpush1.msra.mxu0 0.0
  %183 = vmatprep.subr.mxu0 0.0
  %184 = vmatpush1.msra.mxu0 0.0
  %185 = vmatprep.subr.mxu0 0.0
  %186 = vmatpush1.msra.mxu0 0.0
  %187 = vmatprep.subr.mxu0 0.0
  %188 = vmatpush1.msra.mxu0 0.0
  %189 = vmatprep.subr.mxu0 0.0
  %190 = vmatpush1.msra.mxu0 0.0
  %191 = vmatprep.subr.mxu0 0.0
  %192 = vmatpush1.msra.mxu0 0.0
  %193 = vmatprep.subr.mxu0 0.0
  %194 = vmatpush1.msra.mxu0 0.0
  %195 = vmatprep.subr.mxu0 0.0
  %196 = vmatpush1.msra.mxu0 0.0
  %197 = vmatprep.subr.mxu0 0.0
  %198 = vmatpush1.msra.mxu0 0.0
  %199 = vmatprep.subr.mxu0 0.0
  %200 = vmatpush1.msra.mxu0 0.0
  %201 = vmatprep.subr.mxu0 0.0
  %202 = vmatpush1.msra.mxu0 0.0
  %203 = vmatprep.subr.mxu0 0.0
  %204 = vmatpush1.msra.mxu0 %v165
  %205 = vmatprep.subr.mxu0 0.0
  %206 = vmatpush1.msra.mxu0 %v160
  %207 = vmatprep.subr.mxu0 0.0
  %208 = vmatpush2.msra.mxu0 0.0
  %209 = vmatprep.subr.mxu0 0.0
  %210 = vmatpush2.msra.mxu0 0.0
  %211 = vmatprep.subr.mxu0 0.0
  %212 = vmatpush2.msra.mxu0 0.0
  %213 = vmatprep.subr.mxu0 0.0
  %214 = vmatpush2.msra.mxu0 0.0
  %215 = vmatprep.subr.mxu0 0.0
  %216 = vmatpush2.msra.mxu0 0.0
  %217 = vmatprep.subr.mxu0 0.0
  %218 = vmatpush2.msra.mxu0 0.0
  %219 = vmatprep.subr.mxu0 0.0
  %220 = vmatpush2.msra.mxu0 0.0
  %221 = vmatprep.subr.mxu0 0.0
  %222 = vmatpush2.msra.mxu0 0.0
  %223 = vmatprep.subr.mxu0 0.0
  %224 = vmatpush2.msra.mxu0 0.0
  %225 = vmatprep.subr.mxu0 0.0
  %226 = vmatpush2.msra.mxu0 0.0
  %227 = vmatprep.subr.mxu0 0.0
  %228 = vmatpush2.msra.mxu0 0.0
  %229 = vmatprep.subr.mxu0 0.0
  %230 = vmatpush2.msra.mxu0 0.0
  %231 = vmatprep.subr.mxu0 0.0
  %232 = vmatpush2.msra.mxu0 0.0
  %233 = vmatprep.subr.mxu0 0.0
  %234 = vmatpush2.msra.mxu0 0.0
  %235 = vmatprep.subr.mxu0 0.0
  %236 = vmatpush2.msra.mxu0 0.0
  %237 = vmatprep.subr.mxu0 0.0
  %238 = vmatpush2.msra.mxu0 0.0
  %239 = vmatprep.mubr.f32.mxu0 0.0
  %240 = vmatmul.mubr.f32.gmra.mxu0 %v170
  %v241 = vpop.f32.mrf.mxu0
  %v242 = vadd.f32 0.0, %v241
  %v243 = vpop.f32.mrf.mxu0
  %244 = vmatprep.mubr.f32.mxu0 0.0
  %245 = vmatmul.mubr.f32.gmra.mxu0 %v173
  %v246 = vpop.f32.mrf.mxu0
  %v247 = vadd.f32 0.0, %v246
  %v248 = vpop.f32.mrf.mxu0
  %249 = vdwg.mxu0
  %252 = vrot.lane.b32.xlu0 %v160, 32
  %v253 = vpop.permute.xlu0 %252
  %254 = vrot.lane.b32.xlu0 %v165, 32
  %v255 = vpop.permute.xlu0 %254
  %vm258 = vcmask 261120
  %v259 = vsel %vm258, %v242, %v253
  %v260 = vsel %vm258, %v247, %v255
  %v261 = vld [vmem:[%s5] sm:$0xff]
  %v262 = vld [vmem:[%s5 + $0x8] sm:$0xff]
  %v263 = vld [vmem:[%s5 + $0x10] sm:$0xff]
  %v264 = vld [vmem:[%s5 + $0x18] sm:$0xff]
  %v265 = vld [vmem:[%s5 + $0x20] sm:$0xff]
  %v266 = vld [vmem:[%s5 + $0x28] sm:$0xff]
  %v267 = vld [vmem:[%s5 + $0x30] sm:$0xff]
  %v268 = vld [vmem:[%s5 + $0x38] sm:$0xff]
  %v269 = vld [vmem:[%s6] sm:$0x1]
  %v271 = vlaneseq
  %v272 = vshrl.u32 %v271, 7
  %v273 = vsub.s32 0, %v272
  %v274 = vrot.slane %v269, %v273
  %vm276 = vcmask 523264
  %v278 = vsel %vm276, %v259, 0
  %v281 = vsel %vm276, %v260, 0
  %283 = vmatprep.subr.mxu0 0.0
  %284 = vmatpush1.msra.mxu0 0.0
  %285 = vmatprep.subr.mxu0 0.0
  %286 = vmatpush1.msra.mxu0 0.0
  %287 = vmatprep.subr.mxu0 0.0
  %288 = vmatpush1.msra.mxu0 0.0
  %289 = vmatprep.subr.mxu0 0.0
  %290 = vmatpush1.msra.mxu0 0.0
  %291 = vmatprep.subr.mxu0 0.0
  %292 = vmatpush1.msra.mxu0 0.0
  %293 = vmatprep.subr.mxu0 0.0
  %294 = vmatpush1.msra.mxu0 0.0
  %295 = vmatprep.subr.mxu0 0.0
  %296 = vmatpush1.msra.mxu0 0.0
  %297 = vmatprep.subr.mxu0 0.0
  %298 = vmatpush1.msra.mxu0 0.0
  %299 = vmatprep.subr.mxu0 0.0
  %300 = vmatpush1.msra.mxu0 %v268
  %301 = vmatprep.subr.mxu0 0.0
  %302 = vmatpush1.msra.mxu0 %v267
  %303 = vmatprep.subr.mxu0 0.0
  %304 = vmatpush1.msra.mxu0 %v266
  %305 = vmatprep.subr.mxu0 0.0
  %306 = vmatpush1.msra.mxu0 %v265
  %307 = vmatprep.subr.mxu0 0.0
  %308 = vmatpush1.msra.mxu0 %v264
  %309 = vmatprep.subr.mxu0 0.0
  %310 = vmatpush1.msra.mxu0 %v263
  %311 = vmatprep.subr.mxu0 0.0
  %312 = vmatpush1.msra.mxu0 %v262
  %313 = vmatprep.subr.mxu0 0.0
  %314 = vmatpush1.msra.mxu0 %v261
  %315 = vmatprep.subr.mxu0 0.0
  %316 = vmatpush2.msra.mxu0 0.0
  %317 = vmatprep.subr.mxu0 0.0
  %318 = vmatpush2.msra.mxu0 0.0
  %319 = vmatprep.subr.mxu0 0.0
  %320 = vmatpush2.msra.mxu0 0.0
  %321 = vmatprep.subr.mxu0 0.0
  %322 = vmatpush2.msra.mxu0 0.0
  %323 = vmatprep.subr.mxu0 0.0
  %324 = vmatpush2.msra.mxu0 0.0
  %325 = vmatprep.subr.mxu0 0.0
  %326 = vmatpush2.msra.mxu0 0.0
  %327 = vmatprep.subr.mxu0 0.0
  %328 = vmatpush2.msra.mxu0 0.0
  %329 = vmatprep.subr.mxu0 0.0
  %330 = vmatpush2.msra.mxu0 0.0
  %331 = vmatprep.subr.mxu0 0.0
  %332 = vmatpush2.msra.mxu0 0.0
  %333 = vmatprep.subr.mxu0 0.0
  %334 = vmatpush2.msra.mxu0 0.0
  %335 = vmatprep.subr.mxu0 0.0
  %336 = vmatpush2.msra.mxu0 0.0
  %337 = vmatprep.subr.mxu0 0.0
  %338 = vmatpush2.msra.mxu0 0.0
  %339 = vmatprep.subr.mxu0 0.0
  %340 = vmatpush2.msra.mxu0 0.0
  %341 = vmatprep.subr.mxu0 0.0
  %342 = vmatpush2.msra.mxu0 0.0
  %343 = vmatprep.subr.mxu0 0.0
  %344 = vmatpush2.msra.mxu0 0.0
  %345 = vmatprep.subr.mxu0 0.0
  %346 = vmatpush2.msra.mxu0 0.0
  %347 = vmatprep.mubr.f32.mxu0 0.0
  %348 = vmatmul.mubr.f32.gmra.mxu0 %v278
  %v349 = vpop.f32.mrf.mxu0
  %v350 = vadd.f32 %v274, %v349
  %v351 = vpop.f32.mrf.mxu0
  %352 = vmatprep.mubr.f32.mxu0 0.0
  %353 = vmatmul.mubr.f32.gmra.mxu0 %v281
  %v354 = vpop.f32.mrf.mxu0
  %v355 = vadd.f32 %v274, %v354
  %v356 = vpop.f32.mrf.mxu0
  %357 = vdwg.mxu0
  %v358 = vmax.f32 %v350, 0.0
  %v359 = vmax.f32 %v355, 0.0
  %v360 = vld [vmem:[%s7] sm:$0xff]
  %v361 = vld [vmem:[%s7 + $0x8] sm:$0xff]
  %v362 = vld [vmem:[%s7 + $0x10] sm:$0xff]
  %v363 = vld [vmem:[%s7 + $0x18] sm:$0xff]
  %v364 = vld [vmem:[%s8] sm:$0x1]
  %v366 = vlaneseq
  %v367 = vshrl.u32 %v366, 7
  %v368 = vsub.s32 0, %v367
  %v369 = vrot.slane %v364, %v368
  %v372 = vsel %vm258, %v358, 0
  %v375 = vsel %vm258, %v359, 0
  %377 = vmatprep.subr.mxu0 0.0
  %378 = vmatpush1.msra.mxu0 0.0
  %379 = vmatprep.subr.mxu0 0.0
  %380 = vmatpush1.msra.mxu0 0.0
  %381 = vmatprep.subr.mxu0 0.0
  %382 = vmatpush1.msra.mxu0 0.0
  %383 = vmatprep.subr.mxu0 0.0
  %384 = vmatpush1.msra.mxu0 0.0
  %385 = vmatprep.subr.mxu0 0.0
  %386 = vmatpush1.msra.mxu0 0.0
  %387 = vmatprep.subr.mxu0 0.0
  %388 = vmatpush1.msra.mxu0 0.0
  %389 = vmatprep.subr.mxu0 0.0
  %390 = vmatpush1.msra.mxu0 0.0
  %391 = vmatprep.subr.mxu0 0.0
  %392 = vmatpush1.msra.mxu0 0.0
  %393 = vmatprep.subr.mxu0 0.0
  %394 = vmatpush1.msra.mxu0 0.0
  %395 = vmatprep.subr.mxu0 0.0
  %396 = vmatpush1.msra.mxu0 0.0
  %397 = vmatprep.subr.mxu0 0.0
  %398 = vmatpush1.msra.mxu0 0.0
  %399 = vmatprep.subr.mxu0 0.0
  %400 = vmatpush1.msra.mxu0 0.0
  %401 = vmatprep.subr.mxu0 0.0
  %402 = vmatpush1.msra.mxu0 %v363
  %403 = vmatprep.subr.mxu0 0.0
  %404 = vmatpush1.msra.mxu0 %v362
  %405 = vmatprep.subr.mxu0 0.0
  %406 = vmatpush1.msra.mxu0 %v361
  %407 = vmatprep.subr.mxu0 0.0
  %408 = vmatpush1.msra.mxu0 %v360
  %409 = vmatprep.subr.mxu0 0.0
  %410 = vmatpush2.msra.mxu0 0.0
  %411 = vmatprep.subr.mxu0 0.0
  %412 = vmatpush2.msra.mxu0 0.0
  %413 = vmatprep.subr.mxu0 0.0
  %414 = vmatpush2.msra.mxu0 0.0
  %415 = vmatprep.subr.mxu0 0.0
  %416 = vmatpush2.msra.mxu0 0.0
  %417 = vmatprep.subr.mxu0 0.0
  %418 = vmatpush2.msra.mxu0 0.0
  %419 = vmatprep.subr.mxu0 0.0
  %420 = vmatpush2.msra.mxu0 0.0
  %421 = vmatprep.subr.mxu0 0.0
  %422 = vmatpush2.msra.mxu0 0.0
  %423 = vmatprep.subr.mxu0 0.0
  %424 = vmatpush2.msra.mxu0 0.0
  %425 = vmatprep.subr.mxu0 0.0
  %426 = vmatpush2.msra.mxu0 0.0
  %427 = vmatprep.subr.mxu0 0.0
  %428 = vmatpush2.msra.mxu0 0.0
  %429 = vmatprep.subr.mxu0 0.0
  %430 = vmatpush2.msra.mxu0 0.0
  %431 = vmatprep.subr.mxu0 0.0
  %432 = vmatpush2.msra.mxu0 0.0
  %433 = vmatprep.subr.mxu0 0.0
  %434 = vmatpush2.msra.mxu0 0.0
  %435 = vmatprep.subr.mxu0 0.0
  %436 = vmatpush2.msra.mxu0 0.0
  %437 = vmatprep.subr.mxu0 0.0
  %438 = vmatpush2.msra.mxu0 0.0
  %439 = vmatprep.subr.mxu0 0.0
  %440 = vmatpush2.msra.mxu0 0.0
  %441 = vmatprep.mubr.f32.mxu0 0.0
  %442 = vmatmul.mubr.f32.gmra.mxu0 %v372
  %v443 = vpop.f32.mrf.mxu0
  %v444 = vadd.f32 %v369, %v443
  %v445 = vpop.f32.mrf.mxu0
  %446 = vmatprep.mubr.f32.mxu0 0.0
  %447 = vmatmul.mubr.f32.gmra.mxu0 %v375
  %v448 = vpop.f32.mrf.mxu0
  %v449 = vadd.f32 %v369, %v448
  %v450 = vpop.f32.mrf.mxu0
  %451 = vdwg.mxu0
  %vm452 = vcmp.gt.f32.partialorder %v444, 0.0
  %vm453 = vcmp.gt.f32.partialorder %v449, 0.0
  %v454 = vmul.f32 %v444, 0.01
  %v455 = vmul.f32 %v449, 0.01
  %v456 = vsel %vm452, %v444, %v454
  %v457 = vsel %vm453, %v449, %v455
  %458 = vmatprep.subr.mxu0 0.0
  %459 = vmatpush1.msra.mxu0 0.0
  %460 = vmatprep.subr.mxu0 0.0
  %461 = vmatpush1.msra.mxu0 0.0
  %462 = vmatprep.subr.mxu0 0.0
  %463 = vmatpush1.msra.mxu0 0.0
  %464 = vmatprep.subr.mxu0 0.0
  %465 = vmatpush1.msra.mxu0 0.0
  %466 = vmatprep.subr.mxu0 0.0
  %467 = vmatpush1.msra.mxu0 0.0
  %468 = vmatprep.subr.mxu0 0.0
  %469 = vmatpush1.msra.mxu0 0.0
  %470 = vmatprep.subr.mxu0 0.0
  %471 = vmatpush1.msra.mxu0 0.0
  %472 = vmatprep.subr.mxu0 0.0
  %473 = vmatpush1.msra.mxu0 0.0
  %474 = vmatprep.subr.mxu0 0.0
  %475 = vmatpush1.msra.mxu0 0.0
  %476 = vmatprep.subr.mxu0 0.0
  %477 = vmatpush1.msra.mxu0 0.0
  %478 = vmatprep.subr.mxu0 0.0
  %479 = vmatpush1.msra.mxu0 0.0
  %480 = vmatprep.subr.mxu0 0.0
  %481 = vmatpush1.msra.mxu0 0.0
  %482 = vmatprep.subr.mxu0 0.0
  %483 = vmatpush1.msra.mxu0 0.0
  %484 = vmatprep.subr.mxu0 0.0
  %485 = vmatpush1.msra.mxu0 0.0
  %486 = vmatprep.subr.mxu0 0.0
  %487 = vmatpush1.msra.mxu0 %v457
  %488 = vmatprep.subr.mxu0 0.0
  %489 = vmatpush1.msra.mxu0 %v456
  %490 = vmatprep.subr.mxu0 0.0
  %491 = vmatpush2.msra.mxu0 0.0
  %492 = vmatprep.subr.mxu0 0.0
  %493 = vmatpush2.msra.mxu0 0.0
  %494 = vmatprep.subr.mxu0 0.0
  %495 = vmatpush2.msra.mxu0 0.0
  %496 = vmatprep.subr.mxu0 0.0
  %497 = vmatpush2.msra.mxu0 0.0
  %498 = vmatprep.subr.mxu0 0.0
  %499 = vmatpush2.msra.mxu0 0.0
  %500 = vmatprep.subr.mxu0 0.0
  %501 = vmatpush2.msra.mxu0 0.0
  %502 = vmatprep.subr.mxu0 0.0
  %503 = vmatpush2.msra.mxu0 0.0
  %504 = vmatprep.subr.mxu0 0.0
  %505 = vmatpush2.msra.mxu0 0.0
  %506 = vmatprep.subr.mxu0 0.0
  %507 = vmatpush2.msra.mxu0 0.0
  %508 = vmatprep.subr.mxu0 0.0
  %509 = vmatpush2.msra.mxu0 0.0
  %510 = vmatprep.subr.mxu0 0.0
  %511 = vmatpush2.msra.mxu0 0.0
  %512 = vmatprep.subr.mxu0 0.0
  %513 = vmatpush2.msra.mxu0 0.0
  %514 = vmatprep.subr.mxu0 0.0
  %515 = vmatpush2.msra.mxu0 0.0
  %516 = vmatprep.subr.mxu0 0.0
  %517 = vmatpush2.msra.mxu0 0.0
  %518 = vmatprep.subr.mxu0 0.0
  %519 = vmatpush2.msra.mxu0 0.0
  %520 = vmatprep.subr.mxu0 0.0
  %521 = vmatpush2.msra.mxu0 0.0
  %522 = vmatprep.mubr.f32.mxu0 0.0
  %523 = vmatmul.mubr.f32.gmra.mxu0 %v170
  %v524 = vpop.f32.mrf.mxu0
  %v525 = vadd.f32 0.0, %v524
  %v526 = vpop.f32.mrf.mxu0
  %527 = vmatprep.mubr.f32.mxu0 0.0
  %528 = vmatmul.mubr.f32.gmra.mxu0 %v173
  %v529 = vpop.f32.mrf.mxu0
  %v530 = vadd.f32 0.0, %v529
  %v531 = vpop.f32.mrf.mxu0
  %532 = vdwg.mxu0
  %535 = vrot.lane.b32.xlu0 %v456, 32
  %v536 = vpop.permute.xlu0 %535
  %537 = vrot.lane.b32.xlu0 %v457, 32
  %v538 = vpop.permute.xlu0 %537
  %v541 = vsel %vm258, %v525, %v536
  %v542 = vsel %vm258, %v530, %v538
  %v543 = vld [vmem:[%s9] sm:$0xff]
  %v544 = vld [vmem:[%s9 + $0x8] sm:$0xff]
  %v545 = vld [vmem:[%s9 + $0x10] sm:$0xff]
  %v546 = vld [vmem:[%s9 + $0x18] sm:$0xff]
  %v547 = vld [vmem:[%s9 + $0x20] sm:$0xff]
  %v548 = vld [vmem:[%s9 + $0x28] sm:$0xff]
  %v549 = vld [vmem:[%s9 + $0x30] sm:$0xff]
  %v550 = vld [vmem:[%s9 + $0x38] sm:$0xff]
  %v551 = vld [vmem:[%s10] sm:$0x1]
  %v553 = vlaneseq
  %v554 = vshrl.u32 %v553, 7
  %v555 = vsub.s32 0, %v554
  %v556 = vrot.slane %v551, %v555
  %v559 = vsel %vm276, %v541, 0
  %v562 = vsel %vm276, %v542, 0
  %564 = vmatprep.subr.mxu0 0.0
  %565 = vmatpush1.msra.mxu0 0.0
  %566 = vmatprep.subr.mxu0 0.0
  %567 = vmatpush1.msra.mxu0 0.0
  %568 = vmatprep.subr.mxu0 0.0
  %569 = vmatpush1.msra.mxu0 0.0
  %570 = vmatprep.subr.mxu0 0.0
  %571 = vmatpush1.msra.mxu0 0.0
  %572 = vmatprep.subr.mxu0 0.0
  %573 = vmatpush1.msra.mxu0 0.0
  %574 = vmatprep.subr.mxu0 0.0
  %575 = vmatpush1.msra.mxu0 0.0
  %576 = vmatprep.subr.mxu0 0.0
  %577 = vmatpush1.msra.mxu0 0.0
  %578 = vmatprep.subr.mxu0 0.0
  %579 = vmatpush1.msra.mxu0 0.0
  %580 = vmatprep.subr.mxu0 0.0
  %581 = vmatpush1.msra.mxu0 %v550
  %582 = vmatprep.subr.mxu0 0.0
  %583 = vmatpush1.msra.mxu0 %v549
  %584 = vmatprep.subr.mxu0 0.0
  %585 = vmatpush1.msra.mxu0 %v548
  %586 = vmatprep.subr.mxu0 0.0
  %587 = vmatpush1.msra.mxu0 %v547
  %588 = vmatprep.subr.mxu0 0.0
  %589 = vmatpush1.msra.mxu0 %v546
  %590 = vmatprep.subr.mxu0 0.0
  %591 = vmatpush1.msra.mxu0 %v545
  %592 = vmatprep.subr.mxu0 0.0
  %593 = vmatpush1.msra.mxu0 %v544
  %594 = vmatprep.subr.mxu0 0.0
  %595 = vmatpush1.msra.mxu0 %v543
  %596 = vmatprep.subr.mxu0 0.0
  %597 = vmatpush2.msra.mxu0 0.0
  %598 = vmatprep.subr.mxu0 0.0
  %599 = vmatpush2.msra.mxu0 0.0
  %600 = vmatprep.subr.mxu0 0.0
  %601 = vmatpush2.msra.mxu0 0.0
  %602 = vmatprep.subr.mxu0 0.0
  %603 = vmatpush2.msra.mxu0 0.0
  %604 = vmatprep.subr.mxu0 0.0
  %605 = vmatpush2.msra.mxu0 0.0
  %606 = vmatprep.subr.mxu0 0.0
  %607 = vmatpush2.msra.mxu0 0.0
  %608 = vmatprep.subr.mxu0 0.0
  %609 = vmatpush2.msra.mxu0 0.0
  %610 = vmatprep.subr.mxu0 0.0
  %611 = vmatpush2.msra.mxu0 0.0
  %612 = vmatprep.subr.mxu0 0.0
  %613 = vmatpush2.msra.mxu0 0.0
  %614 = vmatprep.subr.mxu0 0.0
  %615 = vmatpush2.msra.mxu0 0.0
  %616 = vmatprep.subr.mxu0 0.0
  %617 = vmatpush2.msra.mxu0 0.0
  %618 = vmatprep.subr.mxu0 0.0
  %619 = vmatpush2.msra.mxu0 0.0
  %620 = vmatprep.subr.mxu0 0.0
  %621 = vmatpush2.msra.mxu0 0.0
  %622 = vmatprep.subr.mxu0 0.0
  %623 = vmatpush2.msra.mxu0 0.0
  %624 = vmatprep.subr.mxu0 0.0
  %625 = vmatpush2.msra.mxu0 0.0
  %626 = vmatprep.subr.mxu0 0.0
  %627 = vmatpush2.msra.mxu0 0.0
  %628 = vmatprep.mubr.f32.mxu0 0.0
  %629 = vmatmul.mubr.f32.gmra.mxu0 %v559
  %v630 = vpop.f32.mrf.mxu0
  %v631 = vadd.f32 %v556, %v630
  %v632 = vpop.f32.mrf.mxu0
  %633 = vmatprep.mubr.f32.mxu0 0.0
  %634 = vmatmul.mubr.f32.gmra.mxu0 %v562
  %v635 = vpop.f32.mrf.mxu0
  %v636 = vadd.f32 %v556, %v635
  %v637 = vpop.f32.mrf.mxu0
  %638 = vdwg.mxu0
  %v639 = vmax.f32 %v631, 0.0
  %v640 = vmax.f32 %v636, 0.0
  %v641 = vld [vmem:[%s11] sm:$0xff]
  %v642 = vld [vmem:[%s11 + $0x8] sm:$0xff]
  %v643 = vld [vmem:[%s11 + $0x10] sm:$0xff]
  %v644 = vld [vmem:[%s11 + $0x18] sm:$0xff]
  %v645 = vld [vmem:[%s12] sm:$0x1]
  %v647 = vlaneseq
  %v648 = vshrl.u32 %v647, 7
  %v649 = vsub.s32 0, %v648
  %v650 = vrot.slane %v645, %v649
  %v653 = vsel %vm258, %v639, 0
  %v656 = vsel %vm258, %v640, 0
  %658 = vmatprep.subr.mxu0 0.0
  %659 = vmatpush1.msra.mxu0 0.0
  %660 = vmatprep.subr.mxu0 0.0
  %661 = vmatpush1.msra.mxu0 0.0
  %662 = vmatprep.subr.mxu0 0.0
  %663 = vmatpush1.msra.mxu0 0.0
  %664 = vmatprep.subr.mxu0 0.0
  %665 = vmatpush1.msra.mxu0 0.0
  %666 = vmatprep.subr.mxu0 0.0
  %667 = vmatpush1.msra.mxu0 0.0
  %668 = vmatprep.subr.mxu0 0.0
  %669 = vmatpush1.msra.mxu0 0.0
  %670 = vmatprep.subr.mxu0 0.0
  %671 = vmatpush1.msra.mxu0 0.0
  %672 = vmatprep.subr.mxu0 0.0
  %673 = vmatpush1.msra.mxu0 0.0
  %674 = vmatprep.subr.mxu0 0.0
  %675 = vmatpush1.msra.mxu0 0.0
  %676 = vmatprep.subr.mxu0 0.0
  %677 = vmatpush1.msra.mxu0 0.0
  %678 = vmatprep.subr.mxu0 0.0
  %679 = vmatpush1.msra.mxu0 0.0
  %680 = vmatprep.subr.mxu0 0.0
  %681 = vmatpush1.msra.mxu0 0.0
  %682 = vmatprep.subr.mxu0 0.0
  %683 = vmatpush1.msra.mxu0 %v644
  %684 = vmatprep.subr.mxu0 0.0
  %685 = vmatpush1.msra.mxu0 %v643
  %686 = vmatprep.subr.mxu0 0.0
  %687 = vmatpush1.msra.mxu0 %v642
  %688 = vmatprep.subr.mxu0 0.0
  %689 = vmatpush1.msra.mxu0 %v641
  %690 = vmatprep.subr.mxu0 0.0
  %691 = vmatpush2.msra.mxu0 0.0
  %692 = vmatprep.subr.mxu0 0.0
  %693 = vmatpush2.msra.mxu0 0.0
  %694 = vmatprep.subr.mxu0 0.0
  %695 = vmatpush2.msra.mxu0 0.0
  %696 = vmatprep.subr.mxu0 0.0
  %697 = vmatpush2.msra.mxu0 0.0
  %698 = vmatprep.subr.mxu0 0.0
  %699 = vmatpush2.msra.mxu0 0.0
  %700 = vmatprep.subr.mxu0 0.0
  %701 = vmatpush2.msra.mxu0 0.0
  %702 = vmatprep.subr.mxu0 0.0
  %703 = vmatpush2.msra.mxu0 0.0
  %704 = vmatprep.subr.mxu0 0.0
  %705 = vmatpush2.msra.mxu0 0.0
  %706 = vmatprep.subr.mxu0 0.0
  %707 = vmatpush2.msra.mxu0 0.0
  %708 = vmatprep.subr.mxu0 0.0
  %709 = vmatpush2.msra.mxu0 0.0
  %710 = vmatprep.subr.mxu0 0.0
  %711 = vmatpush2.msra.mxu0 0.0
  %712 = vmatprep.subr.mxu0 0.0
  %713 = vmatpush2.msra.mxu0 0.0
  %714 = vmatprep.subr.mxu0 0.0
  %715 = vmatpush2.msra.mxu0 0.0
  %716 = vmatprep.subr.mxu0 0.0
  %717 = vmatpush2.msra.mxu0 0.0
  %718 = vmatprep.subr.mxu0 0.0
  %719 = vmatpush2.msra.mxu0 0.0
  %720 = vmatprep.subr.mxu0 0.0
  %721 = vmatpush2.msra.mxu0 0.0
  %722 = vmatprep.mubr.f32.mxu0 0.0
  %723 = vmatmul.mubr.f32.gmra.mxu0 %v653
  %v724 = vpop.f32.mrf.mxu0
  %v725 = vadd.f32 %v650, %v724
  %v726 = vpop.f32.mrf.mxu0
  %727 = vmatprep.mubr.f32.mxu0 0.0
  %728 = vmatmul.mubr.f32.gmra.mxu0 %v656
  %v729 = vpop.f32.mrf.mxu0
  %v730 = vadd.f32 %v650, %v729
  %v731 = vpop.f32.mrf.mxu0
  %732 = vdwg.mxu0
  %vm733 = vcmp.gt.f32.partialorder %v725, 0.0
  %vm734 = vcmp.gt.f32.partialorder %v730, 0.0
  %v735 = vmul.f32 %v725, 0.01
  %v736 = vmul.f32 %v730, 0.01
  %v737 = vsel %vm733, %v725, %v735
  %v738 = vsel %vm734, %v730, %v736
  %739 = vmatprep.subr.mxu0 0.0
  %740 = vmatpush1.msra.mxu0 0.0
  %741 = vmatprep.subr.mxu0 0.0
  %742 = vmatpush1.msra.mxu0 0.0
  %743 = vmatprep.subr.mxu0 0.0
  %744 = vmatpush1.msra.mxu0 0.0
  %745 = vmatprep.subr.mxu0 0.0
  %746 = vmatpush1.msra.mxu0 0.0
  %747 = vmatprep.subr.mxu0 0.0
  %748 = vmatpush1.msra.mxu0 0.0
  %749 = vmatprep.subr.mxu0 0.0
  %750 = vmatpush1.msra.mxu0 0.0
  %751 = vmatprep.subr.mxu0 0.0
  %752 = vmatpush1.msra.mxu0 0.0
  %753 = vmatprep.subr.mxu0 0.0
  %754 = vmatpush1.msra.mxu0 0.0
  %755 = vmatprep.subr.mxu0 0.0
  %756 = vmatpush1.msra.mxu0 0.0
  %757 = vmatprep.subr.mxu0 0.0
  %758 = vmatpush1.msra.mxu0 0.0
  %759 = vmatprep.subr.mxu0 0.0
  %760 = vmatpush1.msra.mxu0 0.0
  %761 = vmatprep.subr.mxu0 0.0
  %762 = vmatpush1.msra.mxu0 0.0
  %763 = vmatprep.subr.mxu0 0.0
  %764 = vmatpush1.msra.mxu0 0.0
  %765 = vmatprep.subr.mxu0 0.0
  %766 = vmatpush1.msra.mxu0 0.0
  %767 = vmatprep.subr.mxu0 0.0
  %768 = vmatpush1.msra.mxu0 %v738
  %769 = vmatprep.subr.mxu0 0.0
  %770 = vmatpush1.msra.mxu0 %v737
  %771 = vmatprep.subr.mxu0 0.0
  %772 = vmatpush2.msra.mxu0 0.0
  %773 = vmatprep.subr.mxu0 0.0
  %774 = vmatpush2.msra.mxu0 0.0
  %775 = vmatprep.subr.mxu0 0.0
  %776 = vmatpush2.msra.mxu0 0.0
  %777 = vmatprep.subr.mxu0 0.0
  %778 = vmatpush2.msra.mxu0 0.0
  %779 = vmatprep.subr.mxu0 0.0
  %780 = vmatpush2.msra.mxu0 0.0
  %781 = vmatprep.subr.mxu0 0.0
  %782 = vmatpush2.msra.mxu0 0.0
  %783 = vmatprep.subr.mxu0 0.0
  %784 = vmatpush2.msra.mxu0 0.0
  %785 = vmatprep.subr.mxu0 0.0
  %786 = vmatpush2.msra.mxu0 0.0
  %787 = vmatprep.subr.mxu0 0.0
  %788 = vmatpush2.msra.mxu0 0.0
  %789 = vmatprep.subr.mxu0 0.0
  %790 = vmatpush2.msra.mxu0 0.0
  %791 = vmatprep.subr.mxu0 0.0
  %792 = vmatpush2.msra.mxu0 0.0
  %793 = vmatprep.subr.mxu0 0.0
  %794 = vmatpush2.msra.mxu0 0.0
  %795 = vmatprep.subr.mxu0 0.0
  %796 = vmatpush2.msra.mxu0 0.0
  %797 = vmatprep.subr.mxu0 0.0
  %798 = vmatpush2.msra.mxu0 0.0
  %799 = vmatprep.subr.mxu0 0.0
  %800 = vmatpush2.msra.mxu0 0.0
  %801 = vmatprep.subr.mxu0 0.0
  %802 = vmatpush2.msra.mxu0 0.0
  %803 = vmatprep.mubr.f32.mxu0 0.0
  %804 = vmatmul.mubr.f32.gmra.mxu0 %v170
  %v805 = vpop.f32.mrf.mxu0
  %v806 = vadd.f32 0.0, %v805
  %v807 = vpop.f32.mrf.mxu0
  %808 = vmatprep.mubr.f32.mxu0 0.0
  %809 = vmatmul.mubr.f32.gmra.mxu0 %v173
  %v810 = vpop.f32.mrf.mxu0
  %v811 = vadd.f32 0.0, %v810
  %v812 = vpop.f32.mrf.mxu0
  %813 = vdwg.mxu0
  %816 = vrot.lane.b32.xlu0 %v737, 32
  %v817 = vpop.permute.xlu0 %816
  %818 = vrot.lane.b32.xlu0 %v738, 32
  %v819 = vpop.permute.xlu0 %818
  %v822 = vsel %vm258, %v806, %v817
  %v823 = vsel %vm258, %v811, %v819
  %v824 = vld [vmem:[%s13] sm:$0xff]
  %v825 = vld [vmem:[%s13 + $0x8] sm:$0xff]
  %v826 = vld [vmem:[%s13 + $0x10] sm:$0xff]
  %v827 = vld [vmem:[%s13 + $0x18] sm:$0xff]
  %v828 = vld [vmem:[%s13 + $0x20] sm:$0xff]
  %v829 = vld [vmem:[%s13 + $0x28] sm:$0xff]
  %v830 = vld [vmem:[%s13 + $0x30] sm:$0xff]
  %v831 = vld [vmem:[%s13 + $0x38] sm:$0xff]
  %v832 = vld [vmem:[%s14] sm:$0x1]
  %v834 = vlaneseq
  %v835 = vshrl.u32 %v834, 7
  %v836 = vsub.s32 0, %v835
  %v837 = vrot.slane %v832, %v836
  %v840 = vsel %vm276, %v822, 0
  %v843 = vsel %vm276, %v823, 0
  %845 = vmatprep.subr.mxu0 0.0
  %846 = vmatpush1.msra.mxu0 0.0
  %847 = vmatprep.subr.mxu0 0.0
  %848 = vmatpush1.msra.mxu0 0.0
  %849 = vmatprep.subr.mxu0 0.0
  %850 = vmatpush1.msra.mxu0 0.0
  %851 = vmatprep.subr.mxu0 0.0
  %852 = vmatpush1.msra.mxu0 0.0
  %853 = vmatprep.subr.mxu0 0.0
  %854 = vmatpush1.msra.mxu0 0.0
  %855 = vmatprep.subr.mxu0 0.0
  %856 = vmatpush1.msra.mxu0 0.0
  %857 = vmatprep.subr.mxu0 0.0
  %858 = vmatpush1.msra.mxu0 0.0
  %859 = vmatprep.subr.mxu0 0.0
  %860 = vmatpush1.msra.mxu0 0.0
  %861 = vmatprep.subr.mxu0 0.0
  %862 = vmatpush1.msra.mxu0 %v831
  %863 = vmatprep.subr.mxu0 0.0
  %864 = vmatpush1.msra.mxu0 %v830
  %865 = vmatprep.subr.mxu0 0.0
  %866 = vmatpush1.msra.mxu0 %v829
  %867 = vmatprep.subr.mxu0 0.0
  %868 = vmatpush1.msra.mxu0 %v828
  %869 = vmatprep.subr.mxu0 0.0
  %870 = vmatpush1.msra.mxu0 %v827
  %871 = vmatprep.subr.mxu0 0.0
  %872 = vmatpush1.msra.mxu0 %v826
  %873 = vmatprep.subr.mxu0 0.0
  %874 = vmatpush1.msra.mxu0 %v825
  %875 = vmatprep.subr.mxu0 0.0
  %876 = vmatpush1.msra.mxu0 %v824
  %877 = vmatprep.subr.mxu0 0.0
  %878 = vmatpush2.msra.mxu0 0.0
  %879 = vmatprep.subr.mxu0 0.0
  %880 = vmatpush2.msra.mxu0 0.0
  %881 = vmatprep.subr.mxu0 0.0
  %882 = vmatpush2.msra.mxu0 0.0
  %883 = vmatprep.subr.mxu0 0.0
  %884 = vmatpush2.msra.mxu0 0.0
  %885 = vmatprep.subr.mxu0 0.0
  %886 = vmatpush2.msra.mxu0 0.0
  %887 = vmatprep.subr.mxu0 0.0
  %888 = vmatpush2.msra.mxu0 0.0
  %889 = vmatprep.subr.mxu0 0.0
  %890 = vmatpush2.msra.mxu0 0.0
  %891 = vmatprep.subr.mxu0 0.0
  %892 = vmatpush2.msra.mxu0 0.0
  %893 = vmatprep.subr.mxu0 0.0
  %894 = vmatpush2.msra.mxu0 0.0
  %895 = vmatprep.subr.mxu0 0.0
  %896 = vmatpush2.msra.mxu0 0.0
  %897 = vmatprep.subr.mxu0 0.0
  %898 = vmatpush2.msra.mxu0 0.0
  %899 = vmatprep.subr.mxu0 0.0
  %900 = vmatpush2.msra.mxu0 0.0
  %901 = vmatprep.subr.mxu0 0.0
  %902 = vmatpush2.msra.mxu0 0.0
  %903 = vmatprep.subr.mxu0 0.0
  %904 = vmatpush2.msra.mxu0 0.0
  %905 = vmatprep.subr.mxu0 0.0
  %906 = vmatpush2.msra.mxu0 0.0
  %907 = vmatprep.subr.mxu0 0.0
  %908 = vmatpush2.msra.mxu0 0.0
  %909 = vmatprep.mubr.f32.mxu0 0.0
  %910 = vmatmul.mubr.f32.gmra.mxu0 %v840
  %v911 = vpop.f32.mrf.mxu0
  %v912 = vadd.f32 %v837, %v911
  %v913 = vpop.f32.mrf.mxu0
  %914 = vmatprep.mubr.f32.mxu0 0.0
  %915 = vmatmul.mubr.f32.gmra.mxu0 %v843
  %v916 = vpop.f32.mrf.mxu0
  %v917 = vadd.f32 %v837, %v916
  %v918 = vpop.f32.mrf.mxu0
  %919 = vdwg.mxu0
  %v920 = vmax.f32 %v912, 0.0
  %v921 = vmax.f32 %v917, 0.0
  %v922 = vld [vmem:[%s15] sm:$0xff]
  %v923 = vld [vmem:[%s15 + $0x8] sm:$0xff]
  %v924 = vld [vmem:[%s16] sm:$0x1]
  %v926 = vlaneseq
  %v927 = vshrl.u32 %v926, 7
  %v928 = vsub.s32 0, %v927
  %v929 = vrot.slane %v924, %v928
  %v932 = vsel %vm168, %v920, 0
  %v935 = vsel %vm168, %v921, 0
  %937 = vmatprep.subr.mxu0 0.0
  %938 = vmatpush1.msra.mxu0 0.0
  %939 = vmatprep.subr.mxu0 0.0
  %940 = vmatpush1.msra.mxu0 0.0
  %941 = vmatprep.subr.mxu0 0.0
  %942 = vmatpush1.msra.mxu0 0.0
  %943 = vmatprep.subr.mxu0 0.0
  %944 = vmatpush1.msra.mxu0 0.0
  %945 = vmatprep.subr.mxu0 0.0
  %946 = vmatpush1.msra.mxu0 0.0
  %947 = vmatprep.subr.mxu0 0.0
  %948 = vmatpush1.msra.mxu0 0.0
  %949 = vmatprep.subr.mxu0 0.0
  %950 = vmatpush1.msra.mxu0 0.0
  %951 = vmatprep.subr.mxu0 0.0
  %952 = vmatpush1.msra.mxu0 0.0
  %953 = vmatprep.subr.mxu0 0.0
  %954 = vmatpush1.msra.mxu0 0.0
  %955 = vmatprep.subr.mxu0 0.0
  %956 = vmatpush1.msra.mxu0 0.0
  %957 = vmatprep.subr.mxu0 0.0
  %958 = vmatpush1.msra.mxu0 0.0
  %959 = vmatprep.subr.mxu0 0.0
  %960 = vmatpush1.msra.mxu0 0.0
  %961 = vmatprep.subr.mxu0 0.0
  %962 = vmatpush1.msra.mxu0 0.0
  %963 = vmatprep.subr.mxu0 0.0
  %964 = vmatpush1.msra.mxu0 0.0
  %965 = vmatprep.subr.mxu0 0.0
  %966 = vmatpush1.msra.mxu0 %v923
  %967 = vmatprep.subr.mxu0 0.0
  %968 = vmatpush1.msra.mxu0 %v922
  %969 = vmatprep.subr.mxu0 0.0
  %970 = vmatpush2.msra.mxu0 0.0
  %971 = vmatprep.subr.mxu0 0.0
  %972 = vmatpush2.msra.mxu0 0.0
  %973 = vmatprep.subr.mxu0 0.0
  %974 = vmatpush2.msra.mxu0 0.0
  %975 = vmatprep.subr.mxu0 0.0
  %976 = vmatpush2.msra.mxu0 0.0
  %977 = vmatprep.subr.mxu0 0.0
  %978 = vmatpush2.msra.mxu0 0.0
  %979 = vmatprep.subr.mxu0 0.0
  %980 = vmatpush2.msra.mxu0 0.0
  %981 = vmatprep.subr.mxu0 0.0
  %982 = vmatpush2.msra.mxu0 0.0
  %983 = vmatprep.subr.mxu0 0.0
  %984 = vmatpush2.msra.mxu0 0.0
  %985 = vmatprep.subr.mxu0 0.0
  %986 = vmatpush2.msra.mxu0 0.0
  %987 = vmatprep.subr.mxu0 0.0
  %988 = vmatpush2.msra.mxu0 0.0
  %989 = vmatprep.subr.mxu0 0.0
  %990 = vmatpush2.msra.mxu0 0.0
  %991 = vmatprep.subr.mxu0 0.0
  %992 = vmatpush2.msra.mxu0 0.0
  %993 = vmatprep.subr.mxu0 0.0
  %994 = vmatpush2.msra.mxu0 0.0
  %995 = vmatprep.subr.mxu0 0.0
  %996 = vmatpush2.msra.mxu0 0.0
  %997 = vmatprep.subr.mxu0 0.0
  %998 = vmatpush2.msra.mxu0 0.0
  %999 = vmatprep.subr.mxu0 0.0
  %1000 = vmatpush2.msra.mxu0 0.0
  %1001 = vmatprep.mubr.f32.mxu0 0.0
  %1002 = vmatmul.mubr.f32.gmra.mxu0 %v932
  %v1003 = vpop.f32.mrf.mxu0
  %v1004 = vadd.f32 %v929, %v1003
  %v1005 = vpop.f32.mrf.mxu0
  %1006 = vmatprep.mubr.f32.mxu0 0.0
  %1007 = vmatmul.mubr.f32.gmra.mxu0 %v935
  %v1008 = vpop.f32.mrf.mxu0
  %v1009 = vadd.f32 %v929, %v1008
  %v1010 = vpop.f32.mrf.mxu0
  %1011 = vdwg.mxu0
  %vm1012 = vcmp.gt.f32.partialorder %v1004, 0.0
  %vm1013 = vcmp.gt.f32.partialorder %v1009, 0.0
  %v1014 = vmul.f32 %v1004, 0.01
  %v1015 = vmul.f32 %v1009, 0.01
  %v1016 = vsel %vm1012, %v1004, %v1014
  %v1017 = vsel %vm1013, %v1009, %v1015
  %v1018 = vld [vmem:[%s1] sm:$0x3]
  %v1020 = vsel %vm168, %v1018, 0
  %1022 = vmatprep.subr.mxu0 0.0
  %1023 = vmatpush1.msra.mxu0 0.0
  %1024 = vmatprep.subr.mxu0 0.0
  %1025 = vmatpush1.msra.mxu0 0.0
  %1026 = vmatprep.subr.mxu0 0.0
  %1027 = vmatpush1.msra.mxu0 0.0
  %1028 = vmatprep.subr.mxu0 0.0
  %1029 = vmatpush1.msra.mxu0 0.0
  %1030 = vmatprep.subr.mxu0 0.0
  %1031 = vmatpush1.msra.mxu0 0.0
  %1032 = vmatprep.subr.mxu0 0.0
  %1033 = vmatpush1.msra.mxu0 0.0
  %1034 = vmatprep.subr.mxu0 0.0
  %1035 = vmatpush1.msra.mxu0 0.0
  %1036 = vmatprep.subr.mxu0 0.0
  %1037 = vmatpush1.msra.mxu0 0.0
  %1038 = vmatprep.subr.mxu0 0.0
  %1039 = vmatpush1.msra.mxu0 0.0
  %1040 = vmatprep.subr.mxu0 0.0
  %1041 = vmatpush1.msra.mxu0 0.0
  %1042 = vmatprep.subr.mxu0 0.0
  %1043 = vmatpush1.msra.mxu0 0.0
  %1044 = vmatprep.subr.mxu0 0.0
  %1045 = vmatpush1.msra.mxu0 0.0
  %1046 = vmatprep.subr.mxu0 0.0
  %1047 = vmatpush1.msra.mxu0 0.0
  %1048 = vmatprep.subr.mxu0 0.0
  %1049 = vmatpush1.msra.mxu0 0.0
  %1050 = vmatprep.subr.mxu0 0.0
  %1051 = vmatpush1.msra.mxu0 %v1017
  %1052 = vmatprep.subr.mxu0 0.0
  %1053 = vmatpush1.msra.mxu0 %v1016
  %1054 = vmatprep.subr.mxu0 0.0
  %1055 = vmatpush2.msra.mxu0 0.0
  %1056 = vmatprep.subr.mxu0 0.0
  %1057 = vmatpush2.msra.mxu0 0.0
  %1058 = vmatprep.subr.mxu0 0.0
  %1059 = vmatpush2.msra.mxu0 0.0
  %1060 = vmatprep.subr.mxu0 0.0
  %1061 = vmatpush2.msra.mxu0 0.0
  %1062 = vmatprep.subr.mxu0 0.0
  %1063 = vmatpush2.msra.mxu0 0.0
  %1064 = vmatprep.subr.mxu0 0.0
  %1065 = vmatpush2.msra.mxu0 0.0
  %1066 = vmatprep.subr.mxu0 0.0
  %1067 = vmatpush2.msra.mxu0 0.0
  %1068 = vmatprep.subr.mxu0 0.0
  %1069 = vmatpush2.msra.mxu0 0.0
  %1070 = vmatprep.subr.mxu0 0.0
  %1071 = vmatpush2.msra.mxu0 0.0
  %1072 = vmatprep.subr.mxu0 0.0
  %1073 = vmatpush2.msra.mxu0 0.0
  %1074 = vmatprep.subr.mxu0 0.0
  %1075 = vmatpush2.msra.mxu0 0.0
  %1076 = vmatprep.subr.mxu0 0.0
  %1077 = vmatpush2.msra.mxu0 0.0
  %1078 = vmatprep.subr.mxu0 0.0
  %1079 = vmatpush2.msra.mxu0 0.0
  %1080 = vmatprep.subr.mxu0 0.0
  %1081 = vmatpush2.msra.mxu0 0.0
  %1082 = vmatprep.subr.mxu0 0.0
  %1083 = vmatpush2.msra.mxu0 0.0
  %1084 = vmatprep.subr.mxu0 0.0
  %1085 = vmatpush2.msra.mxu0 0.0
  %1086 = vmatprep.mubr.f32.mxu0 0.0
  %1087 = vmatmul.mubr.f32.gmra.mxu0 %v1020
  %v1088 = vpop.f32.mrf.mxu0
  %v1089 = vadd.f32 0.0, %v1088
  %v1090 = vpop.f32.mrf.mxu0
  %1091 = vdwg.mxu0
  %v1092 = vld [vmem:[%s17] sm:$0xff]
  %v1093 = vld [vmem:[%s17 + $0x8] sm:$0xff]
  %v1094 = vld [vmem:[%s18] sm:$0x1]
  %v1096 = vlaneseq
  %v1097 = vshrl.u32 %v1096, 7
  %v1098 = vsub.s32 0, %v1097
  %v1099 = vrot.slane %v1094, %v1098
  %v1102 = vsel %vm168, %v1089, 0
  %1104 = vmatprep.subr.mxu0 0.0
  %1105 = vmatpush1.msra.mxu0 0.0
  %1106 = vmatprep.subr.mxu0 0.0
  %1107 = vmatpush1.msra.mxu0 0.0
  %1108 = vmatprep.subr.mxu0 0.0
  %1109 = vmatpush1.msra.mxu0 0.0
  %1110 = vmatprep.subr.mxu0 0.0
  %1111 = vmatpush1.msra.mxu0 0.0
  %1112 = vmatprep.subr.mxu0 0.0
  %1113 = vmatpush1.msra.mxu0 0.0
  %1114 = vmatprep.subr.mxu0 0.0
  %1115 = vmatpush1.msra.mxu0 0.0
  %1116 = vmatprep.subr.mxu0 0.0
  %1117 = vmatpush1.msra.mxu0 0.0
  %1118 = vmatprep.subr.mxu0 0.0
  %1119 = vmatpush1.msra.mxu0 0.0
  %1120 = vmatprep.subr.mxu0 0.0
  %1121 = vmatpush1.msra.mxu0 0.0
  %1122 = vmatprep.subr.mxu0 0.0
  %1123 = vmatpush1.msra.mxu0 0.0
  %1124 = vmatprep.subr.mxu0 0.0
  %1125 = vmatpush1.msra.mxu0 0.0
  %1126 = vmatprep.subr.mxu0 0.0
  %1127 = vmatpush1.msra.mxu0 0.0
  %1128 = vmatprep.subr.mxu0 0.0
  %1129 = vmatpush1.msra.mxu0 0.0
  %1130 = vmatprep.subr.mxu0 0.0
  %1131 = vmatpush1.msra.mxu0 0.0
  %1132 = vmatprep.subr.mxu0 0.0
  %1133 = vmatpush1.msra.mxu0 %v1093
  %1134 = vmatprep.subr.mxu0 0.0
  %1135 = vmatpush1.msra.mxu0 %v1092
  %1136 = vmatprep.subr.mxu0 0.0
  %1137 = vmatpush2.msra.mxu0 0.0
  %1138 = vmatprep.subr.mxu0 0.0
  %1139 = vmatpush2.msra.mxu0 0.0
  %1140 = vmatprep.subr.mxu0 0.0
  %1141 = vmatpush2.msra.mxu0 0.0
  %1142 = vmatprep.subr.mxu0 0.0
  %1143 = vmatpush2.msra.mxu0 0.0
  %1144 = vmatprep.subr.mxu0 0.0
  %1145 = vmatpush2.msra.mxu0 0.0
  %1146 = vmatprep.subr.mxu0 0.0
  %1147 = vmatpush2.msra.mxu0 0.0
  %1148 = vmatprep.subr.mxu0 0.0
  %1149 = vmatpush2.msra.mxu0 0.0
  %1150 = vmatprep.subr.mxu0 0.0
  %1151 = vmatpush2.msra.mxu0 0.0
  %1152 = vmatprep.subr.mxu0 0.0
  %1153 = vmatpush2.msra.mxu0 0.0
  %1154 = vmatprep.subr.mxu0 0.0
  %1155 = vmatpush2.msra.mxu0 0.0
  %1156 = vmatprep.subr.mxu0 0.0
  %1157 = vmatpush2.msra.mxu0 0.0
  %1158 = vmatprep.subr.mxu0 0.0
  %1159 = vmatpush2.msra.mxu0 0.0
  %1160 = vmatprep.subr.mxu0 0.0
  %1161 = vmatpush2.msra.mxu0 0.0
  %1162 = vmatprep.subr.mxu0 0.0
  %1163 = vmatpush2.msra.mxu0 0.0
  %1164 = vmatprep.subr.mxu0 0.0
  %1165 = vmatpush2.msra.mxu0 0.0
  %1166 = vmatprep.subr.mxu0 0.0
  %1167 = vmatpush2.msra.mxu0 0.0
  %1168 = vmatprep.mubr.f32.mxu0 0.0
  %1169 = vmatmul.mubr.f32.gmra.mxu0 %v1102
  %v1170 = vpop.f32.mrf.mxu0
  %v1171 = vadd.f32 %v1099, %v1170
  %v1172 = vpop.f32.mrf.mxu0
  %1173 = vdwg.mxu0
  %v1174 = vld [vmem:[%s19] sm:$0x1]
  %v1176 = vlaneseq
  %v1177 = vshrl.u32 %v1176, 7
  %v1178 = vsub.s32 0, %v1177
  %v1179 = vrot.slane %v1174, %v1178
  %v1181 = vmul.f32 %v1171, %v1179
  %v1182 = vld [vmem:[%s20] sm:$0x1]
  %v1184 = vlaneseq
  %v1185 = vshrl.u32 %v1184, 7
  %v1186 = vsub.s32 0, %v1185
  %v1187 = vrot.slane %v1182, %v1186
  %v1189 = vadd.f32 %v1181, %v1187
  %vm1190 = vcmp.gt.f32.partialorder %v1189, 0.0
  %v1191 = vmul.f32 %v1189, 0.01
  %v1192 = vsel %vm1190, %v1189, %v1191
  %v1193 = vld [vmem:[%s21] sm:$0xff]
  %v1194 = vld [vmem:[%s21 + $0x8] sm:$0xff]
  %v1195 = vld [vmem:[%s21 + $0x10] sm:$0xff]
  %v1196 = vld [vmem:[%s21 + $0x18] sm:$0xff]
  %v1197 = vld [vmem:[%s22] sm:$0x1]
  %v1199 = vlaneseq
  %v1200 = vshrl.u32 %v1199, 7
  %v1201 = vsub.s32 0, %v1200
  %v1202 = vrot.slane %v1197, %v1201
  %v1205 = vsel %vm258, %v1192, 0
  %1207 = vmatprep.subr.mxu0 0.0
  %1208 = vmatpush1.msra.mxu0 0.0
  %1209 = vmatprep.subr.mxu0 0.0
  %1210 = vmatpush1.msra.mxu0 0.0
  %1211 = vmatprep.subr.mxu0 0.0
  %1212 = vmatpush1.msra.mxu0 0.0
  %1213 = vmatprep.subr.mxu0 0.0
  %1214 = vmatpush1.msra.mxu0 0.0
  %1215 = vmatprep.subr.mxu0 0.0
  %1216 = vmatpush1.msra.mxu0 0.0
  %1217 = vmatprep.subr.mxu0 0.0
  %1218 = vmatpush1.msra.mxu0 0.0
  %1219 = vmatprep.subr.mxu0 0.0
  %1220 = vmatpush1.msra.mxu0 0.0
  %1221 = vmatprep.subr.mxu0 0.0
  %1222 = vmatpush1.msra.mxu0 0.0
  %1223 = vmatprep.subr.mxu0 0.0
  %1224 = vmatpush1.msra.mxu0 0.0
  %1225 = vmatprep.subr.mxu0 0.0
  %1226 = vmatpush1.msra.mxu0 0.0
  %1227 = vmatprep.subr.mxu0 0.0
  %1228 = vmatpush1.msra.mxu0 0.0
  %1229 = vmatprep.subr.mxu0 0.0
  %1230 = vmatpush1.msra.mxu0 0.0
  %1231 = vmatprep.subr.mxu0 0.0
  %1232 = vmatpush1.msra.mxu0 %v1196
  %1233 = vmatprep.subr.mxu0 0.0
  %1234 = vmatpush1.msra.mxu0 %v1195
  %1235 = vmatprep.subr.mxu0 0.0
  %1236 = vmatpush1.msra.mxu0 %v1194
  %1237 = vmatprep.subr.mxu0 0.0
  %1238 = vmatpush1.msra.mxu0 %v1193
  %1239 = vmatprep.subr.mxu0 0.0
  %1240 = vmatpush2.msra.mxu0 0.0
  %1241 = vmatprep.subr.mxu0 0.0
  %1242 = vmatpush2.msra.mxu0 0.0
  %1243 = vmatprep.subr.mxu0 0.0
  %1244 = vmatpush2.msra.mxu0 0.0
  %1245 = vmatprep.subr.mxu0 0.0
  %1246 = vmatpush2.msra.mxu0 0.0
  %1247 = vmatprep.subr.mxu0 0.0
  %1248 = vmatpush2.msra.mxu0 0.0
  %1249 = vmatprep.subr.mxu0 0.0
  %1250 = vmatpush2.msra.mxu0 0.0
  %1251 = vmatprep.subr.mxu0 0.0
  %1252 = vmatpush2.msra.mxu0 0.0
  %1253 = vmatprep.subr.mxu0 0.0
  %1254 = vmatpush2.msra.mxu0 0.0
  %1255 = vmatprep.subr.mxu0 0.0
  %1256 = vmatpush2.msra.mxu0 0.0
  %1257 = vmatprep.subr.mxu0 0.0
  %1258 = vmatpush2.msra.mxu0 0.0
  %1259 = vmatprep.subr.mxu0 0.0
  %1260 = vmatpush2.msra.mxu0 0.0
  %1261 = vmatprep.subr.mxu0 0.0
  %1262 = vmatpush2.msra.mxu0 0.0
  %1263 = vmatprep.subr.mxu0 0.0
  %1264 = vmatpush2.msra.mxu0 0.0
  %1265 = vmatprep.subr.mxu0 0.0
  %1266 = vmatpush2.msra.mxu0 0.0
  %1267 = vmatprep.subr.mxu0 0.0
  %1268 = vmatpush2.msra.mxu0 0.0
  %1269 = vmatprep.subr.mxu0 0.0
  %1270 = vmatpush2.msra.mxu0 0.0
  %1271 = vmatprep.mubr.f32.mxu0 0.0
  %1272 = vmatmul.mubr.f32.gmra.mxu0 %v1205
  %v1273 = vpop.f32.mrf.mxu0
  %v1274 = vadd.f32 %v1202, %v1273
  %v1275 = vpop.f32.mrf.mxu0
  %1276 = vdwg.mxu0
  %v1277 = vmax.f32 %v1274, 0.0
  %1278 = vst [vmem:[%s23] sm:$0x3] %v1277
  // Predicated region
  $region94: #{sage_lut_forward.1} parent=0 // pred_check
    _
  $region95: #{sage_lut_forward.1} parent=0 // pred_check_branch
    %1280 = sbr.rel (0) target = $region97
  $region96: #{sage_lut_forward.1} parent=0 // pred_region
    _
  $region97: #{sage_lut_forward.1} parent=0 // pred_fallthru
    _
  // Predicated region
  $region98: #{sage_lut_forward.1} parent=0 // pred_check
    _
  $region99: #{sage_lut_forward.1} parent=0 // pred_check_branch
    %1282 = sbr.rel (0) target = $region101
  $region100: #{sage_lut_forward.1} parent=0 // pred_region
    _
  $region101: #{sage_lut_forward.1} parent=0 // pred_fallthru
    _

</llo_original>
